<compile_context>
chip_gen: v5e
topology: v5e:2x2
jax: 0.10.0
libtpu: 0.0.40
codegen_flags: <defaults>
</compile_context>

<pallas_src>
import functools
import math

import jax
import jax.numpy as jnp
from jax.experimental import pallas as pl
from jax.experimental.pallas import tpu as pltpu


# ----------------------------------------------------------------------------
# helpers
# ----------------------------------------------------------------------------
def _round_up(x, m):
    return (x + m - 1) // m * m


def _pad2(a, rows, cols):
    pr, pc = rows - a.shape[0], cols - a.shape[1]
    if pr == 0 and pc == 0:
        return a
    return jnp.pad(a, ((0, pr), (0, pc)))


# ----------------------------------------------------------------------------
# Pallas kernels
# ----------------------------------------------------------------------------
def _matmul_kernel(x_ref, w_ref, b_ref, o_ref, acc_ref, *, activation):
    # grid = (M/tm, N/tn, K/tk); K is the innermost (reduction) axis.
    @pl.when(pl.program_id(2) == 0)
    def _():
        acc_ref[...] = jnp.zeros_like(acc_ref)

    acc_ref[...] += jnp.dot(x_ref[...], w_ref[...],
                            preferred_element_type=jnp.float32)

    @pl.when(pl.program_id(2) == pl.num_programs(2) - 1)
    def _():
        y = acc_ref[...] + b_ref[...].astype(jnp.float32)
        if activation == "relu":          # epilogue fused on the VPU (f32)
            y = jnp.maximum(y, 0.0)
        o_ref[...] = y.astype(o_ref.dtype)


def _matmul_res_kernel(x_ref, w_ref, b_ref, r_ref, o_ref, acc_ref, *,
                       activation):
    @pl.when(pl.program_id(2) == 0)
    def _():
        acc_ref[...] = jnp.zeros_like(acc_ref)

    acc_ref[...] += jnp.dot(x_ref[...], w_ref[...],
                            preferred_element_type=jnp.float32)

    @pl.when(pl.program_id(2) == pl.num_programs(2) - 1)
    def _():
        y = acc_ref[...] + b_ref[...].astype(jnp.float32)
        if activation == "relu":
            y = jnp.maximum(y, 0.0)
        y = y + r_ref[...].astype(jnp.float32)   # fused residual add
        o_ref[...] = y.astype(o_ref.dtype)


def pallas_linear(x2d, w, b, *, activation=None, residual=None):
    """y = act(x2d @ w + b) [+ residual]  with x2d:(M,K), w:(K,N) -> (M,N).

    Tiles are 128/256-aligned (capped so per-block VMEM stays well under the
    v7x 64 MiB budget even when double-buffered), with a K grid axis + f32
    VMEM accumulator so weights are streamed once per (i, j) output tile.
    """
    M, K = x2d.shape
    K2, N = w.shape
    assert K == K2
    out_dtype = x2d.dtype

    tm = min(256, _round_up(M, 8))
    tn = min(256, _round_up(N, 128))
    tk = min(512, _round_up(K, 128))
    Mp, Np, Kp = _round_up(M, tm), _round_up(N, tn), _round_up(K, tk)

    xp = _pad2(x2d, Mp, Kp)
    wp = _pad2(w, Kp, Np)
    bp = _pad2(b.reshape(1, N), 1, Np)

    in_specs = [
        pl.BlockSpec((tm, tk), lambda i, j, k: (i, k)),
        pl.BlockSpec((tk, tn), lambda i, j, k: (k, j)),
        pl.BlockSpec((1, tn), lambda i, j, k: (0, j)),
    ]
    args = [xp, wp, bp]
    if residual is not None:
        args.append(_pad2(residual, Mp, Np))
        in_specs.append(pl.BlockSpec((tm, tn), lambda i, j, k: (i, j)))
        kernel = functools.partial(_matmul_res_kernel, activation=activation)
    else:
        kernel = functools.partial(_matmul_kernel, activation=activation)

    out = pl.pallas_call(
        kernel,
        out_shape=jax.ShapeDtypeStruct((Mp, Np), out_dtype),
        grid_spec=pltpu.PrefetchScalarGridSpec(
            num_scalar_prefetch=0,
            grid=(Mp // tm, Np // tn, Kp // tk),
            in_specs=in_specs,
            out_specs=pl.BlockSpec((tm, tn), lambda i, j, k: (i, j)),
            scratch_shapes=[pltpu.VMEM((tm, tn), jnp.float32)],
        ),
        compiler_params=pltpu.CompilerParams(
            dimension_semantics=("parallel", "parallel", "arbitrary")),
    )(*args)
    return out[:M, :N]


def _layernorm_kernel(x_ref, g_ref, b_ref, o_ref):
    x = x_ref[...].astype(jnp.float32)
    mu = jnp.mean(x, axis=-1, keepdims=True)
    var = jnp.mean(jnp.square(x - mu), axis=-1, keepdims=True)
    y = (x - mu) * jax.lax.rsqrt(var + 1e-5)
    o_ref[...] = (y * g_ref[...].astype(jnp.float32)
                  + b_ref[...].astype(jnp.float32)).astype(o_ref.dtype)


def pallas_layernorm(x2d, gamma, beta):
    """LayerNorm over the feature axis of a (M, E) slab (large row tiles)."""
    M, E = x2d.shape
    tm = min(512, _round_up(M, 8))
    Mp = _round_up(M, tm)
    xp = _pad2(x2d, Mp, E)
    out = pl.pallas_call(
        _layernorm_kernel,
        out_shape=jax.ShapeDtypeStruct((Mp, E), x2d.dtype),
        grid_spec=pltpu.PrefetchScalarGridSpec(
            num_scalar_prefetch=0,
            grid=(Mp // tm,),
            in_specs=[
                pl.BlockSpec((tm, E), lambda i: (i, 0)),
                pl.BlockSpec((1, E), lambda i: (0, 0)),
                pl.BlockSpec((1, E), lambda i: (0, 0)),
            ],
            out_specs=pl.BlockSpec((tm, E), lambda i: (i, 0)),
        ),
        compiler_params=pltpu.CompilerParams(dimension_semantics=("parallel",)),
    )(xp, gamma.reshape(1, E), beta.reshape(1, E))
    return out[:M]


def _attention_kernel(q_ref, k_ref, v_ref, m_ref, o_ref, *, scale):
    # One (batch, head) pair per grid point: everything stays in VMEM.
    q = q_ref[...].astype(jnp.float32)
    k = k_ref[...].astype(jnp.float32)
    v = v_ref[...].astype(jnp.float32)
    s = jax.lax.dot_general(q, k, (((1,), (1,)), ((), ())),
                            preferred_element_type=jnp.float32) * scale
    s = jnp.where(m_ref[...] > 0, s, -1e9)
    s = s - jnp.max(s, axis=-1, keepdims=True)
    p = jnp.exp(s)
    p = p / jnp.sum(p, axis=-1, keepdims=True)
    o_ref[...] = jnp.dot(p, v, preferred_element_type=jnp.float32
                         ).astype(o_ref.dtype)


def pallas_attention(q, k, v, attn_mask):
    """q,k,v: (B, H, S, D); attn_mask: (B, S, S) {0,1} float -> (B, H, S, D)."""
    B, H, S, D = q.shape
    kernel = functools.partial(_attention_kernel, scale=1.0 / math.sqrt(D))
    qkv_spec = pl.BlockSpec((None, None, S, D), lambda b, h: (b, h, 0, 0))
    return pl.pallas_call(
        kernel,
        out_shape=jax.ShapeDtypeStruct((B, H, S, D), q.dtype),
        grid_spec=pltpu.PrefetchScalarGridSpec(
            num_scalar_prefetch=0,
            grid=(B, H),
            in_specs=[
                qkv_spec, qkv_spec, qkv_spec,
                pl.BlockSpec((None, S, S), lambda b, h: (b, 0, 0)),
            ],
            out_specs=pl.BlockSpec((None, None, S, D),
                                   lambda b, h: (b, h, 0, 0)),
        ),
        compiler_params=pltpu.CompilerParams(
            dimension_semantics=("parallel", "parallel")),
    )(q, k, v, attn_mask)


# ----------------------------------------------------------------------------
# Parameter init (deterministic, mirrors the nn.Module shapes)
# ----------------------------------------------------------------------------
def _dense(key, fan_in, fan_out):
    kw, kb = jax.random.split(key)
    lim = 1.0 / math.sqrt(fan_in)
    w = jax.random.uniform(kw, (fan_in, fan_out), jnp.float32, -lim, lim)
    b = jax.random.uniform(kb, (fan_out,), jnp.float32, -lim, lim)
    return w, b


def sinusoidal_pe(seq_len, embed_dim):
    pos = jnp.arange(seq_len, dtype=jnp.float32)[:, None]
    i = jnp.arange(0, embed_dim, 2, dtype=jnp.float32)
    div = jnp.exp(-math.log(10000.0) * i / embed_dim)
    pe = jnp.zeros((seq_len, embed_dim), jnp.float32)
    pe = pe.at[:, 0::2].set(jnp.sin(pos * div))
    pe = pe.at[:, 1::2].set(jnp.cos(pos * div))
    return pe


def init_params(key, number_of_tokens, embedding_dimension, number_of_layers,
                feed_forward_dimension, max_sequence_length):
    V, E, FF = number_of_tokens, embedding_dimension, feed_forward_dimension
    keys = jax.random.split(key, 2 + number_of_layers)
    params = {
        "tok_emb": jax.random.normal(keys[0], (V, E), jnp.float32) * 0.02,
        # positional encoding hoisted out of the forward pass
        "pos_enc": sinusoidal_pe(max_sequence_length, E),
        "ln0": (jnp.ones((E,), jnp.float32), jnp.zeros((E,), jnp.float32)),
        "lm_head": _dense(keys[1], E, V),
        "layers": [],
    }
    for l in range(number_of_layers):
        kl = jax.random.split(keys[2 + l], 6)
        wq, bq = _dense(kl[0], E, E)
        wk, bk = _dense(kl[1], E, E)
        wv, bv = _dense(kl[2], E, E)
        params["layers"].append(dict(
            # fused QKV projection: one (E, 3E) matmul instead of three
            wqkv=(jnp.concatenate([wq, wk, wv], axis=1),
                  jnp.concatenate([bq, bk, bv], axis=0)),
            wo=_dense(kl[3], E, E),
            w1=_dense(kl[4], E, FF),
            w2=_dense(kl[5], FF, E),
            ln1=(jnp.ones((E,), jnp.float32), jnp.zeros((E,), jnp.float32)),
            ln2=(jnp.ones((E,), jnp.float32), jnp.zeros((E,), jnp.float32)),
        ))
    return params


# ----------------------------------------------------------------------------
# Forward pass
# ----------------------------------------------------------------------------
def language_model_forward(params, tokens, mask, *, number_of_heads):
    """tokens: (B, S) int32, mask: (B, S) {0,1} -> logits (B, S, V)."""
    B, S = tokens.shape
    V, E = params["tok_emb"].shape
    H = number_of_heads
    Dh = E // H

    # Token embedding + (precomputed) positional encoding (glue).
    x = params["tok_emb"][tokens] + params["pos_enc"][None, :S]      # (B,S,E)

    # Initial LayerNorm (Pallas).
    x = pallas_layernorm(x.reshape(B * S, E), *params["ln0"])        # (B*S,E)

    # Combined causal + key-padding attention mask: (B, S, S).
    causal = jnp.tril(jnp.ones((S, S), jnp.float32))
    attn_mask = causal[None] * mask.astype(jnp.float32)[:, None, :]

    for lyr in params["layers"]:
        # --- masked multi-head self-attention (fused QKV + fused attention) ---
        qkv = pallas_linear(x, *lyr["wqkv"])                          # (B*S,3E)
        qkv = qkv.reshape(B, S, 3, H, Dh)
        q = jnp.transpose(qkv[:, :, 0], (0, 2, 1, 3))                 # (B,H,S,Dh)
        k = jnp.transpose(qkv[:, :, 1], (0, 2, 1, 3))
        v = jnp.transpose(qkv[:, :, 2], (0, 2, 1, 3))
        ctx = pallas_attention(q, k, v, attn_mask)                    # (B,H,S,Dh)
        ctx = jnp.transpose(ctx, (0, 2, 1, 3)).reshape(B * S, E)

        # Output projection with fused residual add, then post-LN.
        attn_res = pallas_linear(ctx, *lyr["wo"], residual=x)
        x2 = pallas_layernorm(attn_res, *lyr["ln1"])

        # Feed-forward: bias+ReLU fused into w1, residual fused into w2.
        h = pallas_linear(x2, *lyr["w1"], activation="relu")
        ffn_res = pallas_linear(h, *lyr["w2"], residual=x2)
        x = pallas_layernorm(ffn_res, *lyr["ln2"])

    # LM head: (B*S, E) @ (E, V) + b  — the main Pallas matmul hot path.
    logits = pallas_linear(x, *params["lm_head"])
    return logits.reshape(B, S, V)


# ----------------------------------------------------------------------------
if __name__ == "__main__":
    # Small, module-consistent shapes.
    number_of_tokens = 128        # vocab size
    max_sequence_length = 8
    embedding_dimension = 32
    number_of_layers = 2
    number_of_heads = 4
    feed_forward_dimension = embedding_dimension * 4
    batch = 2

    key = jax.random.PRNGKey(0)
    kp, kt = jax.random.split(key)
    params = init_params(kp, number_of_tokens, embedding_dimension,
                         number_of_layers, feed_forward_dimension,
                         max_sequence_length)

    tokens = jax.random.randint(kt, (batch, max_sequence_length), 0,
                                number_of_tokens, dtype=jnp.int32)
    mask = jnp.ones((batch, max_sequence_length), dtype=jnp.int32)

    fwd = jax.jit(functools.partial(language_model_forward,
                                    number_of_heads=number_of_heads))
    logits = fwd(params, tokens, mask)
    logits = jax.block_until_ready(logits)

    assert logits.shape == (batch, max_sequence_length, number_of_tokens)
    assert bool(jnp.all(jnp.isfinite(logits)))
    print("KERNEL_OK")
</pallas_src>

<mosaic_0001>
module attributes {stable_mosaic.version = 11 : i64} {
  func.func @_layernorm_kernel(%arg0: i32, %arg1: memref<16x32xf32, #tpu.memory_space<vmem>>, %arg2: memref<1x32xf32, #tpu.memory_space<vmem>>, %arg3: memref<1x32xf32, #tpu.memory_space<vmem>>, %arg4: memref<16x32xf32, #tpu.memory_space<vmem>>) attributes {dimension_semantics = [#tpu.dimension_semantics<parallel>], iteration_bounds = array<i64: 1>, scalar_prefetch = 0 : i64, scratch_operands = 0 : i64, tpu.core_type = #tpu.core_type<tc>, window_params = [{transform_indices = @transform_0, window_bounds = array<i64: 16, 32>}, {pipeline_mode = #tpu.pipeline_mode<synchronous>, transform_indices = @transform_1, window_bounds = array<i64: 1, 32>}, {pipeline_mode = #tpu.pipeline_mode<synchronous>, transform_indices = @transform_2, window_bounds = array<i64: 1, 32>}, {transform_indices = @transform_3, window_bounds = array<i64: 16, 32>}]} {
    %c0 = arith.constant 0 : index
    %c0_0 = arith.constant 0 : index
    %0 = vector.load %arg1[%c0, %c0_0] : memref<16x32xf32, #tpu.memory_space<vmem>>, vector<16x32xf32>
    %cst = arith.constant dense<0.000000e+00> : vector<16xf32>
    %1 = vector.multi_reduction <add>, %0, %cst [1] : vector<16x32xf32> to vector<16xf32>
    %2 = vector.shape_cast %1 : vector<16xf32> to vector<16x1xf32>
    %cst_1 = arith.constant 3.200000e+01 : f32
    %3 = vector.broadcast %cst_1 : f32 to vector<16x1xf32>
    %4 = arith.divf %2, %3 : vector<16x1xf32>
    %5 = vector.broadcast %4 : vector<16x1xf32> to vector<16x32xf32>
    %6 = arith.subf %0, %5 : vector<16x32xf32>
    %7 = arith.mulf %6, %6 : vector<16x32xf32>
    %cst_2 = arith.constant dense<0.000000e+00> : vector<16xf32>
    %8 = vector.multi_reduction <add>, %7, %cst_2 [1] : vector<16x32xf32> to vector<16xf32>
    %9 = vector.shape_cast %8 : vector<16xf32> to vector<16x1xf32>
    %cst_3 = arith.constant 3.200000e+01 : f32
    %10 = vector.broadcast %cst_3 : f32 to vector<16x1xf32>
    %11 = arith.divf %9, %10 : vector<16x1xf32>
    %12 = vector.broadcast %4 : vector<16x1xf32> to vector<16x32xf32>
    %13 = arith.subf %0, %12 : vector<16x32xf32>
    %cst_4 = arith.constant 9.99999974E-6 : f32
    %14 = vector.broadcast %cst_4 : f32 to vector<16x1xf32>
    %15 = arith.addf %11, %14 : vector<16x1xf32>
    %16 = math.rsqrt %15 : vector<16x1xf32>
    %17 = vector.broadcast %16 : vector<16x1xf32> to vector<16x32xf32>
    %18 = arith.mulf %13, %17 : vector<16x32xf32>
    %c0_5 = arith.constant 0 : index
    %c0_6 = arith.constant 0 : index
    %19 = vector.load %arg2[%c0_5, %c0_6] : memref<1x32xf32, #tpu.memory_space<vmem>>, vector<1x32xf32>
    %20 = vector.broadcast %19 : vector<1x32xf32> to vector<16x32xf32>
    %21 = arith.mulf %18, %20 : vector<16x32xf32>
    %c0_7 = arith.constant 0 : index
    %c0_8 = arith.constant 0 : index
    %22 = vector.load %arg3[%c0_7, %c0_8] : memref<1x32xf32, #tpu.memory_space<vmem>>, vector<1x32xf32>
    %23 = vector.broadcast %22 : vector<1x32xf32> to vector<16x32xf32>
    %24 = arith.addf %21, %23 : vector<16x32xf32>
    %c0_9 = arith.constant 0 : index
    %c0_10 = arith.constant 0 : index
    %25 = vector.load %arg4[%c0_9, %c0_10] : memref<16x32xf32, #tpu.memory_space<vmem>>, vector<16x32xf32>
    tpu.vector_store %arg4[%c0_9, %c0_10], %24 {strides = array<i32>} : memref<16x32xf32, #tpu.memory_space<vmem>>, vector<16x32xf32>,
    return
  }
  func.func @transform_0(%arg0: i32) -> (i32, i32) {
    %c0_i32 = arith.constant 0 : i32
    %c0_i32_0 = arith.constant 0 : i32
    return %arg0, %c0_i32 : i32, i32
  }
  func.func @transform_1(%arg0: i32) -> (i32, i32) {
    %c0_i32 = arith.constant 0 : i32
    %c0_i32_0 = arith.constant 0 : i32
    %c0_i32_1 = arith.constant 0 : i32
    return %c0_i32, %c0_i32_0 : i32, i32
  }
  func.func @transform_2(%arg0: i32) -> (i32, i32) {
    %c0_i32 = arith.constant 0 : i32
    %c0_i32_0 = arith.constant 0 : i32
    %c0_i32_1 = arith.constant 0 : i32
    return %c0_i32, %c0_i32_0 : i32, i32
  }
  func.func @transform_3(%arg0: i32) -> (i32, i32) {
    %c0_i32 = arith.constant 0 : i32
    %c0_i32_0 = arith.constant 0 : i32
    return %arg0, %c0_i32 : i32, i32
  }
}

module attributes {stable_mosaic.version = 11 : i64} {
  func.func @_matmul_kernel(%arg0: i32, %arg1: i32, %arg2: i32, %arg3: memref<16x128xf32, #tpu.memory_space<vmem>>, %arg4: memref<128x128xf32, #tpu.memory_space<vmem>>, %arg5: memref<1x128xf32, #tpu.memory_space<vmem>>, %arg6: memref<16x128xf32, #tpu.memory_space<vmem>>, %arg7: memref<16x128xf32, #tpu.memory_space<vmem>>) attributes {dimension_semantics = [#tpu.dimension_semantics<parallel>, #tpu.dimension_semantics<parallel>, #tpu.dimension_semantics<arbitrary>], iteration_bounds = array<i64: 1, 1, 1>, scalar_prefetch = 0 : i64, scratch_operands = 1 : i64, tpu.core_type = #tpu.core_type<tc>, window_params = [{transform_indices = @transform_0, window_bounds = array<i64: 16, 128>}, {transform_indices = @transform_1, window_bounds = array<i64: 128, 128>}, {transform_indices = @transform_2, window_bounds = array<i64: 1, 128>}, {transform_indices = @transform_3, window_bounds = array<i64: 16, 128>}]} {
    %c0_i32 = arith.constant 0 : i32
    %0 = arith.cmpi eq, %arg2, %c0_i32 : i32
    %1 = arith.extui %0 : i1 to i32
    %c0_i32_0 = arith.constant 0 : i32
    %2 = arith.cmpi ne, %1, %c0_i32_0 : i32
    scf.if %2 {
      %cst_10 = arith.constant 0.000000e+00 : f32
      %12 = vector.broadcast %cst_10 : f32 to vector<16x128xf32>
      %c0_11 = arith.constant 0 : index
      %c0_12 = arith.constant 0 : index
      %13 = vector.load %arg7[%c0_11, %c0_12] : memref<16x128xf32, #tpu.memory_space<vmem>>, vector<16x128xf32>
      tpu.vector_store %arg7[%c0_11, %c0_12], %12 {strides = array<i32>} : memref<16x128xf32, #tpu.memory_space<vmem>>, vector<16x128xf32>,
    } else {
    }
    %c0 = arith.constant 0 : index
    %c0_1 = arith.constant 0 : index
    %3 = vector.load %arg7[%c0, %c0_1] : memref<16x128xf32, #tpu.memory_space<vmem>>, vector<16x128xf32>
    %c0_2 = arith.constant 0 : index
    %c0_3 = arith.constant 0 : index
    %4 = vector.load %arg3[%c0_2, %c0_3] : memref<16x128xf32, #tpu.memory_space<vmem>>, vector<16x128xf32>
    %c0_4 = arith.constant 0 : index
    %c0_5 = arith.constant 0 : index
    %5 = vector.load %arg4[%c0_4, %c0_5] : memref<128x128xf32, #tpu.memory_space<vmem>>, vector<128x128xf32>
    %cst = arith.constant dense<0.000000e+00> : vector<16x128xf32>
    %6 = tpu.matmul %4, %5, %cst {dimension_numbers = #tpu.dot_dimension_numbers<[1], [0], [0], [1], [0, 0, 1, 1], [], []>} : vector<16x128xf32>, vector<128x128xf32>, vector<16x128xf32> -> vector<16x128xf32>
    %7 = arith.addf %3, %6 : vector<16x128xf32>
    %c0_6 = arith.constant 0 : index
    %c0_7 = arith.constant 0 : index
    %8 = vector.load %arg7[%c0_6, %c0_7] : memref<16x128xf32, #tpu.memory_space<vmem>>, vector<16x128xf32>
    tpu.vector_store %arg7[%c0_6, %c0_7], %7 {strides = array<i32>} : memref<16x128xf32, #tpu.memory_space<vmem>>, vector<16x128xf32>,
    %c0_i32_8 = arith.constant 0 : i32
    %9 = arith.cmpi eq, %arg2, %c0_i32_8 : i32
    %10 = arith.extui %9 : i1 to i32
    %c0_i32_9 = arith.constant 0 : i32
    %11 = arith.cmpi ne, %10, %c0_i32_9 : i32
    scf.if %11 {
      %c0_10 = arith.constant 0 : index
      %c0_11 = arith.constant 0 : index
      %12 = vector.load %arg7[%c0_10, %c0_11] : memref<16x128xf32, #tpu.memory_space<vmem>>, vector<16x128xf32>
      %c0_12 = arith.constant 0 : index
      %c0_13 = arith.constant 0 : index
      %13 = vector.load %arg5[%c0_12, %c0_13] : memref<1x128xf32, #tpu.memory_space<vmem>>, vector<1x128xf32>
      %14 = vector.broadcast %13 : vector<1x128xf32> to vector<16x128xf32>
      %15 = arith.addf %12, %14 : vector<16x128xf32>
      %c0_14 = arith.constant 0 : index
      %c0_15 = arith.constant 0 : index
      %16 = vector.load %arg6[%c0_14, %c0_15] : memref<16x128xf32, #tpu.memory_space<vmem>>, vector<16x128xf32>
      tpu.vector_store %arg6[%c0_14, %c0_15], %15 {strides = array<i32>} : memref<16x128xf32, #tpu.memory_space<vmem>>, vector<16x128xf32>,
    } else {
    }
    return
  }
  func.func @transform_0(%arg0: i32, %arg1: i32, %arg2: i32) -> (i32, i32) {
    %c0_i32 = arith.constant 0 : i32
    return %arg0, %arg2 : i32, i32
  }
  func.func @transform_1(%arg0: i32, %arg1: i32, %arg2: i32) -> (i32, i32) {
    %c0_i32 = arith.constant 0 : i32
    return %arg2, %arg1 : i32, i32
  }
  func.func @transform_2(%arg0: i32, %arg1: i32, %arg2: i32) -> (i32, i32) {
    %c0_i32 = arith.constant 0 : i32
    %c0_i32_0 = arith.constant 0 : i32
    return %c0_i32, %arg1 : i32, i32
  }
  func.func @transform_3(%arg0: i32, %arg1: i32, %arg2: i32) -> (i32, i32) {
    %c0_i32 = arith.constant 0 : i32
    return %arg0, %arg1 : i32, i32
  }
}

module attributes {stable_mosaic.version = 11 : i64} {
  func.func @_attention_kernel(%arg0: i32, %arg1: i32, %arg2: memref<1x1x8x8xf32, #tpu.memory_space<vmem>>, %arg3: memref<1x1x8x8xf32, #tpu.memory_space<vmem>>, %arg4: memref<1x1x8x8xf32, #tpu.memory_space<vmem>>, %arg5: memref<1x8x8xf32, #tpu.memory_space<vmem>>, %arg6: memref<1x1x8x8xf32, #tpu.memory_space<vmem>>) attributes {dimension_semantics = [#tpu.dimension_semantics<parallel>, #tpu.dimension_semantics<parallel>], iteration_bounds = array<i64: 2, 4>, scalar_prefetch = 0 : i64, scratch_operands = 0 : i64, tpu.core_type = #tpu.core_type<tc>, window_params = [{transform_indices = @transform_0, window_bounds = array<i64: 1, 1, 8, 8>}, {transform_indices = @transform_1, window_bounds = array<i64: 1, 1, 8, 8>}, {transform_indices = @transform_2, window_bounds = array<i64: 1, 1, 8, 8>}, {transform_indices = @transform_3, window_bounds = array<i64: 1, 8, 8>}, {transform_indices = @transform_4, window_bounds = array<i64: 1, 1, 8, 8>}]} {
    %c0 = arith.constant 0 : index
    %c0_0 = arith.constant 0 : index
    %c0_1 = arith.constant 0 : index
    %c0_2 = arith.constant 0 : index
    %0 = vector.load %arg2[%c0, %c0_0, %c0_1, %c0_2] : memref<1x1x8x8xf32, #tpu.memory_space<vmem>>, vector<1x1x8x8xf32>
    %1 = vector.shape_cast %0 : vector<1x1x8x8xf32> to vector<8x8xf32>
    %c0_3 = arith.constant 0 : index
    %c0_4 = arith.constant 0 : index
    %c0_5 = arith.constant 0 : index
    %c0_6 = arith.constant 0 : index
    %2 = vector.load %arg3[%c0_3, %c0_4, %c0_5, %c0_6] : memref<1x1x8x8xf32, #tpu.memory_space<vmem>>, vector<1x1x8x8xf32>
    %3 = vector.shape_cast %2 : vector<1x1x8x8xf32> to vector<8x8xf32>
    %c0_7 = arith.constant 0 : index
    %c0_8 = arith.constant 0 : index
    %c0_9 = arith.constant 0 : index
    %c0_10 = arith.constant 0 : index
    %4 = vector.load %arg4[%c0_7, %c0_8, %c0_9, %c0_10] : memref<1x1x8x8xf32, #tpu.memory_space<vmem>>, vector<1x1x8x8xf32>
    %5 = vector.shape_cast %4 : vector<1x1x8x8xf32> to vector<8x8xf32>
    %cst = arith.constant dense<0.000000e+00> : vector<8x8xf32>
    %6 = tpu.matmul %1, %3, %cst {dimension_numbers = #tpu.dot_dimension_numbers<[1], [1], [0], [0], [0, 0, 1, 0], [], []>} : vector<8x8xf32>, vector<8x8xf32>, vector<8x8xf32> -> vector<8x8xf32>
    %cst_11 = arith.constant 0.353553385 : f32
    %7 = vector.broadcast %cst_11 : f32 to vector<8x8xf32>
    %8 = arith.mulf %6, %7 : vector<8x8xf32>
    %c0_12 = arith.constant 0 : index
    %c0_13 = arith.constant 0 : index
    %c0_14 = arith.constant 0 : index
    %9 = vector.load %arg5[%c0_12, %c0_13, %c0_14] : memref<1x8x8xf32, #tpu.memory_space<vmem>>, vector<1x8x8xf32>
    %10 = vector.shape_cast %9 : vector<1x8x8xf32> to vector<8x8xf32>
    %cst_15 = arith.constant 0.000000e+00 : f32
    %11 = vector.broadcast %cst_15 : f32 to vector<8x8xf32>
    %12 = arith.cmpf ogt, %10, %11 : vector<8x8xf32>
    %cst_16 = arith.constant -1.000000e+09 : f32
    %13 = vector.broadcast %cst_16 : f32 to vector<8x8xf32>
    %14 = arith.select %12, %8, %13 : vector<8x8xi1>, vector<8x8xf32>
    %cst_17 = arith.constant dense<0xFF800000> : vector<8xf32>
    %15 = vector.multi_reduction <maximumf>, %14, %cst_17 [1] : vector<8x8xf32> to vector<8xf32>
    %16 = vector.shape_cast %15 : vector<8xf32> to vector<8x1xf32>
    %17 = vector.broadcast %16 : vector<8x1xf32> to vector<8x8xf32>
    %18 = arith.subf %14, %17 : vector<8x8xf32>
    %19 = math.exp %18 : vector<8x8xf32>
    %cst_18 = arith.constant dense<0.000000e+00> : vector<8xf32>
    %20 = vector.multi_reduction <add>, %19, %cst_18 [1] : vector<8x8xf32> to vector<8xf32>
    %21 = vector.shape_cast %20 : vector<8xf32> to vector<8x1xf32>
    %22 = vector.broadcast %21 : vector<8x1xf32> to vector<8x8xf32>
    %23 = arith.divf %19, %22 : vector<8x8xf32>
    %cst_19 = arith.constant dense<0.000000e+00> : vector<8x8xf32>
    %24 = tpu.matmul %23, %5, %cst_19 {dimension_numbers = #tpu.dot_dimension_numbers<[1], [0], [0], [1], [0, 0, 1, 1], [], []>} : vector<8x8xf32>, vector<8x8xf32>, vector<8x8xf32> -> vector<8x8xf32>
    %c0_20 = arith.constant 0 : index
    %c0_21 = arith.constant 0 : index
    %c0_22 = arith.constant 0 : index
    %c0_23 = arith.constant 0 : index
    %25 = vector.load %arg6[%c0_20, %c0_21, %c0_22, %c0_23] : memref<1x1x8x8xf32, #tpu.memory_space<vmem>>, vector<1x1x8x8xf32>
    %26 = vector.shape_cast %25 : vector<1x1x8x8xf32> to vector<8x8xf32>
    %27 = vector.shape_cast %24 : vector<8x8xf32> to vector<1x1x8x8xf32>
    tpu.vector_store %arg6[%c0_20, %c0_21, %c0_22, %c0_23], %27 {strides = array<i32>} : memref<1x1x8x8xf32, #tpu.memory_space<vmem>>, vector<1x1x8x8xf32>,
    return
  }
  func.func @transform_0(%arg0: i32, %arg1: i32) -> (i32, i32, i32, i32) {
    %c0_i32 = arith.constant 0 : i32
    %c0_i32_0 = arith.constant 0 : i32
    %c0_i32_1 = arith.constant 0 : i32
    return %arg0, %arg1, %c0_i32, %c0_i32_0 : i32, i32, i32, i32
  }
  func.func @transform_1(%arg0: i32, %arg1: i32) -> (i32, i32, i32, i32) {
    %c0_i32 = arith.constant 0 : i32
    %c0_i32_0 = arith.constant 0 : i32
    %c0_i32_1 = arith.constant 0 : i32
    return %arg0, %arg1, %c0_i32, %c0_i32_0 : i32, i32, i32, i32
  }
  func.func @transform_2(%arg0: i32, %arg1: i32) -> (i32, i32, i32, i32) {
    %c0_i32 = arith.constant 0 : i32
    %c0_i32_0 = arith.constant 0 : i32
    %c0_i32_1 = arith.constant 0 : i32
    return %arg0, %arg1, %c0_i32, %c0_i32_0 : i32, i32, i32, i32
  }
  func.func @transform_3(%arg0: i32, %arg1: i32) -> (i32, i32, i32) {
    %c0_i32 = arith.constant 0 : i32
    %c0_i32_0 = arith.constant 0 : i32
    %c0_i32_1 = arith.constant 0 : i32
    return %arg0, %c0_i32, %c0_i32_0 : i32, i32, i32
  }
  func.func @transform_4(%arg0: i32, %arg1: i32) -> (i32, i32, i32, i32) {
    %c0_i32 = arith.constant 0 : i32
    %c0_i32_0 = arith.constant 0 : i32
    %c0_i32_1 = arith.constant 0 : i32
    return %arg0, %arg1, %c0_i32, %c0_i32_0 : i32, i32, i32, i32
  }
}

module attributes {stable_mosaic.version = 11 : i64} {
  func.func @_matmul_kernel(%arg0: i32, %arg1: i32, %arg2: i32, %arg3: memref<16x128xf32, #tpu.memory_space<vmem>>, %arg4: memref<128x128xf32, #tpu.memory_space<vmem>>, %arg5: memref<1x128xf32, #tpu.memory_space<vmem>>, %arg6: memref<16x128xf32, #tpu.memory_space<vmem>>, %arg7: memref<16x128xf32, #tpu.memory_space<vmem>>) attributes {dimension_semantics = [#tpu.dimension_semantics<parallel>, #tpu.dimension_semantics<parallel>, #tpu.dimension_semantics<arbitrary>], iteration_bounds = array<i64: 1, 1, 1>, scalar_prefetch = 0 : i64, scratch_operands = 1 : i64, tpu.core_type = #tpu.core_type<tc>, window_params = [{transform_indices = @transform_0, window_bounds = array<i64: 16, 128>}, {transform_indices = @transform_1, window_bounds = array<i64: 128, 128>}, {transform_indices = @transform_2, window_bounds = array<i64: 1, 128>}, {transform_indices = @transform_3, window_bounds = array<i64: 16, 128>}]} {
    %c0_i32 = arith.constant 0 : i32
    %0 = arith.cmpi eq, %arg2, %c0_i32 : i32
    %1 = arith.extui %0 : i1 to i32
    %c0_i32_0 = arith.constant 0 : i32
    %2 = arith.cmpi ne, %1, %c0_i32_0 : i32
    scf.if %2 {
      %cst_10 = arith.constant 0.000000e+00 : f32
      %12 = vector.broadcast %cst_10 : f32 to vector<16x128xf32>
      %c0_11 = arith.constant 0 : index
      %c0_12 = arith.constant 0 : index
      %13 = vector.load %arg7[%c0_11, %c0_12] : memref<16x128xf32, #tpu.memory_space<vmem>>, vector<16x128xf32>
      tpu.vector_store %arg7[%c0_11, %c0_12], %12 {strides = array<i32>} : memref<16x128xf32, #tpu.memory_space<vmem>>, vector<16x128xf32>,
    } else {
    }
    %c0 = arith.constant 0 : index
    %c0_1 = arith.constant 0 : index
    %3 = vector.load %arg7[%c0, %c0_1] : memref<16x128xf32, #tpu.memory_space<vmem>>, vector<16x128xf32>
    %c0_2 = arith.constant 0 : index
    %c0_3 = arith.constant 0 : index
    %4 = vector.load %arg3[%c0_2, %c0_3] : memref<16x128xf32, #tpu.memory_space<vmem>>, vector<16x128xf32>
    %c0_4 = arith.constant 0 : index
    %c0_5 = arith.constant 0 : index
    %5 = vector.load %arg4[%c0_4, %c0_5] : memref<128x128xf32, #tpu.memory_space<vmem>>, vector<128x128xf32>
    %cst = arith.constant dense<0.000000e+00> : vector<16x128xf32>
    %6 = tpu.matmul %4, %5, %cst {dimension_numbers = #tpu.dot_dimension_numbers<[1], [0], [0], [1], [0, 0, 1, 1], [], []>} : vector<16x128xf32>, vector<128x128xf32>, vector<16x128xf32> -> vector<16x128xf32>
    %7 = arith.addf %3, %6 : vector<16x128xf32>
    %c0_6 = arith.constant 0 : index
    %c0_7 = arith.constant 0 : index
    %8 = vector.load %arg7[%c0_6, %c0_7] : memref<16x128xf32, #tpu.memory_space<vmem>>, vector<16x128xf32>
    tpu.vector_store %arg7[%c0_6, %c0_7], %7 {strides = array<i32>} : memref<16x128xf32, #tpu.memory_space<vmem>>, vector<16x128xf32>,
    %c0_i32_8 = arith.constant 0 : i32
    %9 = arith.cmpi eq, %arg2, %c0_i32_8 : i32
    %10 = arith.extui %9 : i1 to i32
    %c0_i32_9 = arith.constant 0 : i32
    %11 = arith.cmpi ne, %10, %c0_i32_9 : i32
    scf.if %11 {
      %c0_10 = arith.constant 0 : index
      %c0_11 = arith.constant 0 : index
      %12 = vector.load %arg7[%c0_10, %c0_11] : memref<16x128xf32, #tpu.memory_space<vmem>>, vector<16x128xf32>
      %c0_12 = arith.constant 0 : index
      %c0_13 = arith.constant 0 : index
      %13 = vector.load %arg5[%c0_12, %c0_13] : memref<1x128xf32, #tpu.memory_space<vmem>>, vector<1x128xf32>
      %14 = vector.broadcast %13 : vector<1x128xf32> to vector<16x128xf32>
      %15 = arith.addf %12, %14 : vector<16x128xf32>
      %cst_14 = arith.constant 0.000000e+00 : f32
      %16 = vector.broadcast %cst_14 : f32 to vector<16x128xf32>
      %17 = arith.maximumf %15, %16 : vector<16x128xf32>
      %c0_15 = arith.constant 0 : index
      %c0_16 = arith.constant 0 : index
      %18 = vector.load %arg6[%c0_15, %c0_16] : memref<16x128xf32, #tpu.memory_space<vmem>>, vector<16x128xf32>
      tpu.vector_store %arg6[%c0_15, %c0_16], %17 {strides = array<i32>} : memref<16x128xf32, #tpu.memory_space<vmem>>, vector<16x128xf32>,
    } else {
    }
    return
  }
  func.func @transform_0(%arg0: i32, %arg1: i32, %arg2: i32) -> (i32, i32) {
    %c0_i32 = arith.constant 0 : i32
    return %arg0, %arg2 : i32, i32
  }
  func.func @transform_1(%arg0: i32, %arg1: i32, %arg2: i32) -> (i32, i32) {
    %c0_i32 = arith.constant 0 : i32
    return %arg2, %arg1 : i32, i32
  }
  func.func @transform_2(%arg0: i32, %arg1: i32, %arg2: i32) -> (i32, i32) {
    %c0_i32 = arith.constant 0 : i32
    %c0_i32_0 = arith.constant 0 : i32
    return %c0_i32, %arg1 : i32, i32
  }
  func.func @transform_3(%arg0: i32, %arg1: i32, %arg2: i32) -> (i32, i32) {
    %c0_i32 = arith.constant 0 : i32
    return %arg0, %arg1 : i32, i32
  }
}

module attributes {stable_mosaic.version = 11 : i64} {
  func.func @_matmul_res_kernel(%arg0: i32, %arg1: i32, %arg2: i32, %arg3: memref<16x128xf32, #tpu.memory_space<vmem>>, %arg4: memref<128x128xf32, #tpu.memory_space<vmem>>, %arg5: memref<1x128xf32, #tpu.memory_space<vmem>>, %arg6: memref<16x128xf32, #tpu.memory_space<vmem>>, %arg7: memref<16x128xf32, #tpu.memory_space<vmem>>, %arg8: memref<16x128xf32, #tpu.memory_space<vmem>>) attributes {dimension_semantics = [#tpu.dimension_semantics<parallel>, #tpu.dimension_semantics<parallel>, #tpu.dimension_semantics<arbitrary>], iteration_bounds = array<i64: 1, 1, 1>, scalar_prefetch = 0 : i64, scratch_operands = 1 : i64, tpu.core_type = #tpu.core_type<tc>, window_params = [{transform_indices = @transform_0, window_bounds = array<i64: 16, 128>}, {transform_indices = @transform_1, window_bounds = array<i64: 128, 128>}, {transform_indices = @transform_2, window_bounds = array<i64: 1, 128>}, {transform_indices = @transform_3, window_bounds = array<i64: 16, 128>}, {transform_indices = @transform_4, window_bounds = array<i64: 16, 128>}]} {
    %c0_i32 = arith.constant 0 : i32
    %0 = arith.cmpi eq, %arg2, %c0_i32 : i32
    %1 = arith.extui %0 : i1 to i32
    %c0_i32_0 = arith.constant 0 : i32
    %2 = arith.cmpi ne, %1, %c0_i32_0 : i32
    scf.if %2 {
      %cst_10 = arith.constant 0.000000e+00 : f32
      %12 = vector.broadcast %cst_10 : f32 to vector<16x128xf32>
      %c0_11 = arith.constant 0 : index
      %c0_12 = arith.constant 0 : index
      %13 = vector.load %arg8[%c0_11, %c0_12] : memref<16x128xf32, #tpu.memory_space<vmem>>, vector<16x128xf32>
      tpu.vector_store %arg8[%c0_11, %c0_12], %12 {strides = array<i32>} : memref<16x128xf32, #tpu.memory_space<vmem>>, vector<16x128xf32>,
    } else {
    }
    %c0 = arith.constant 0 : index
    %c0_1 = arith.constant 0 : index
    %3 = vector.load %arg8[%c0, %c0_1] : memref<16x128xf32, #tpu.memory_space<vmem>>, vector<16x128xf32>
    %c0_2 = arith.constant 0 : index
    %c0_3 = arith.constant 0 : index
    %4 = vector.load %arg3[%c0_2, %c0_3] : memref<16x128xf32, #tpu.memory_space<vmem>>, vector<16x128xf32>
    %c0_4 = arith.constant 0 : index
    %c0_5 = arith.constant 0 : index
    %5 = vector.load %arg4[%c0_4, %c0_5] : memref<128x128xf32, #tpu.memory_space<vmem>>, vector<128x128xf32>
    %cst = arith.constant dense<0.000000e+00> : vector<16x128xf32>
    %6 = tpu.matmul %4, %5, %cst {dimension_numbers = #tpu.dot_dimension_numbers<[1], [0], [0], [1], [0, 0, 1, 1], [], []>} : vector<16x128xf32>, vector<128x128xf32>, vector<16x128xf32> -> vector<16x128xf32>
    %7 = arith.addf %3, %6 : vector<16x128xf32>
    %c0_6 = arith.constant 0 : index
    %c0_7 = arith.constant 0 : index
    %8 = vector.load %arg8[%c0_6, %c0_7] : memref<16x128xf32, #tpu.memory_space<vmem>>, vector<16x128xf32>
    tpu.vector_store %arg8[%c0_6, %c0_7], %7 {strides = array<i32>} : memref<16x128xf32, #tpu.memory_space<vmem>>, vector<16x128xf32>,
    %c0_i32_8 = arith.constant 0 : i32
    %9 = arith.cmpi eq, %arg2, %c0_i32_8 : i32
    %10 = arith.extui %9 : i1 to i32
    %c0_i32_9 = arith.constant 0 : i32
    %11 = arith.cmpi ne, %10, %c0_i32_9 : i32
    scf.if %11 {
      %c0_10 = arith.constant 0 : index
      %c0_11 = arith.constant 0 : index
      %12 = vector.load %arg8[%c0_10, %c0_11] : memref<16x128xf32, #tpu.memory_space<vmem>>, vector<16x128xf32>
      %c0_12 = arith.constant 0 : index
      %c0_13 = arith.constant 0 : index
      %13 = vector.load %arg5[%c0_12, %c0_13] : memref<1x128xf32, #tpu.memory_space<vmem>>, vector<1x128xf32>
      %14 = vector.broadcast %13 : vector<1x128xf32> to vector<16x128xf32>
      %15 = arith.addf %12, %14 : vector<16x128xf32>
      %c0_14 = arith.constant 0 : index
      %c0_15 = arith.constant 0 : index
      %16 = vector.load %arg6[%c0_14, %c0_15] : memref<16x128xf32, #tpu.memory_space<vmem>>, vector<16x128xf32>
      %17 = arith.addf %15, %16 : vector<16x128xf32>
      %c0_16 = arith.constant 0 : index
      %c0_17 = arith.constant 0 : index
      %18 = vector.load %arg7[%c0_16, %c0_17] : memref<16x128xf32, #tpu.memory_space<vmem>>, vector<16x128xf32>
      tpu.vector_store %arg7[%c0_16, %c0_17], %17 {strides = array<i32>} : memref<16x128xf32, #tpu.memory_space<vmem>>, vector<16x128xf32>,
    } else {
    }
    return
  }
  func.func @transform_0(%arg0: i32, %arg1: i32, %arg2: i32) -> (i32, i32) {
    %c0_i32 = arith.constant 0 : i32
    return %arg0, %arg2 : i32, i32
  }
  func.func @transform_1(%arg0: i32, %arg1: i32, %arg2: i32) -> (i32, i32) {
    %c0_i32 = arith.constant 0 : i32
    return %arg2, %arg1 : i32, i32
  }
  func.func @transform_2(%arg0: i32, %arg1: i32, %arg2: i32) -> (i32, i32) {
    %c0_i32 = arith.constant 0 : i32
    %c0_i32_0 = arith.constant 0 : i32
    return %c0_i32, %arg1 : i32, i32
  }
  func.func @transform_3(%arg0: i32, %arg1: i32, %arg2: i32) -> (i32, i32) {
    %c0_i32 = arith.constant 0 : i32
    return %arg0, %arg1 : i32, i32
  }
  func.func @transform_4(%arg0: i32, %arg1: i32, %arg2: i32) -> (i32, i32) {
    %c0_i32 = arith.constant 0 : i32
    return %arg0, %arg1 : i32, i32
  }
}

module attributes {stable_mosaic.version = 11 : i64} {
  func.func @_matmul_kernel(%arg0: i32, %arg1: i32, %arg2: i32, %arg3: memref<16x128xf32, #tpu.memory_space<vmem>>, %arg4: memref<128x128xf32, #tpu.memory_space<vmem>>, %arg5: memref<1x128xf32, #tpu.memory_space<vmem>>, %arg6: memref<16x128xf32, #tpu.memory_space<vmem>>, %arg7: memref<16x128xf32, #tpu.memory_space<vmem>>) attributes {dimension_semantics = [#tpu.dimension_semantics<parallel>, #tpu.dimension_semantics<parallel>, #tpu.dimension_semantics<arbitrary>], iteration_bounds = array<i64: 1, 1, 1>, scalar_prefetch = 0 : i64, scratch_operands = 1 : i64, tpu.core_type = #tpu.core_type<tc>, window_params = [{transform_indices = @transform_0, window_bounds = array<i64: 16, 128>}, {transform_indices = @transform_1, window_bounds = array<i64: 128, 128>}, {transform_indices = @transform_2, window_bounds = array<i64: 1, 128>}, {transform_indices = @transform_3, window_bounds = array<i64: 16, 128>}]} {
    %c0_i32 = arith.constant 0 : i32
    %0 = arith.cmpi eq, %arg2, %c0_i32 : i32
    %1 = arith.extui %0 : i1 to i32
    %c0_i32_0 = arith.constant 0 : i32
    %2 = arith.cmpi ne, %1, %c0_i32_0 : i32
    scf.if %2 {
      %cst_10 = arith.constant 0.000000e+00 : f32
      %12 = vector.broadcast %cst_10 : f32 to vector<16x128xf32>
      %c0_11 = arith.constant 0 : index
      %c0_12 = arith.constant 0 : index
      %13 = vector.load %arg7[%c0_11, %c0_12] : memref<16x128xf32, #tpu.memory_space<vmem>>, vector<16x128xf32>
      tpu.vector_store %arg7[%c0_11, %c0_12], %12 {strides = array<i32>} : memref<16x128xf32, #tpu.memory_space<vmem>>, vector<16x128xf32>,
    } else {
    }
    %c0 = arith.constant 0 : index
    %c0_1 = arith.constant 0 : index
    %3 = vector.load %arg7[%c0, %c0_1] : memref<16x128xf32, #tpu.memory_space<vmem>>, vector<16x128xf32>
    %c0_2 = arith.constant 0 : index
    %c0_3 = arith.constant 0 : index
    %4 = vector.load %arg3[%c0_2, %c0_3] : memref<16x128xf32, #tpu.memory_space<vmem>>, vector<16x128xf32>
    %c0_4 = arith.constant 0 : index
    %c0_5 = arith.constant 0 : index
    %5 = vector.load %arg4[%c0_4, %c0_5] : memref<128x128xf32, #tpu.memory_space<vmem>>, vector<128x128xf32>
    %cst = arith.constant dense<0.000000e+00> : vector<16x128xf32>
    %6 = tpu.matmul %4, %5, %cst {dimension_numbers = #tpu.dot_dimension_numbers<[1], [0], [0], [1], [0, 0, 1, 1], [], []>} : vector<16x128xf32>, vector<128x128xf32>, vector<16x128xf32> -> vector<16x128xf32>
    %7 = arith.addf %3, %6 : vector<16x128xf32>
    %c0_6 = arith.constant 0 : index
    %c0_7 = arith.constant 0 : index
    %8 = vector.load %arg7[%c0_6, %c0_7] : memref<16x128xf32, #tpu.memory_space<vmem>>, vector<16x128xf32>
    tpu.vector_store %arg7[%c0_6, %c0_7], %7 {strides = array<i32>} : memref<16x128xf32, #tpu.memory_space<vmem>>, vector<16x128xf32>,
    %c0_i32_8 = arith.constant 0 : i32
    %9 = arith.cmpi eq, %arg2, %c0_i32_8 : i32
    %10 = arith.extui %9 : i1 to i32
    %c0_i32_9 = arith.constant 0 : i32
    %11 = arith.cmpi ne, %10, %c0_i32_9 : i32
    scf.if %11 {
      %c0_10 = arith.constant 0 : index
      %c0_11 = arith.constant 0 : index
      %12 = vector.load %arg7[%c0_10, %c0_11] : memref<16x128xf32, #tpu.memory_space<vmem>>, vector<16x128xf32>
      %c0_12 = arith.constant 0 : index
      %c0_13 = arith.constant 0 : index
      %13 = vector.load %arg5[%c0_12, %c0_13] : memref<1x128xf32, #tpu.memory_space<vmem>>, vector<1x128xf32>
      %14 = vector.broadcast %13 : vector<1x128xf32> to vector<16x128xf32>
      %15 = arith.addf %12, %14 : vector<16x128xf32>
      %c0_14 = arith.constant 0 : index
      %c0_15 = arith.constant 0 : index
      %16 = vector.load %arg6[%c0_14, %c0_15] : memref<16x128xf32, #tpu.memory_space<vmem>>, vector<16x128xf32>
      tpu.vector_store %arg6[%c0_14, %c0_15], %15 {strides = array<i32>} : memref<16x128xf32, #tpu.memory_space<vmem>>, vector<16x128xf32>,
    } else {
    }
    return
  }
  func.func @transform_0(%arg0: i32, %arg1: i32, %arg2: i32) -> (i32, i32) {
    %c0_i32 = arith.constant 0 : i32
    return %arg0, %arg2 : i32, i32
  }
  func.func @transform_1(%arg0: i32, %arg1: i32, %arg2: i32) -> (i32, i32) {
    %c0_i32 = arith.constant 0 : i32
    return %arg2, %arg1 : i32, i32
  }
  func.func @transform_2(%arg0: i32, %arg1: i32, %arg2: i32) -> (i32, i32) {
    %c0_i32 = arith.constant 0 : i32
    %c0_i32_0 = arith.constant 0 : i32
    return %c0_i32, %arg1 : i32, i32
  }
  func.func @transform_3(%arg0: i32, %arg1: i32, %arg2: i32) -> (i32, i32) {
    %c0_i32 = arith.constant 0 : i32
    return %arg0, %arg1 : i32, i32
  }
}

</mosaic_0001>

<llo_original>
// kernel: language_model_forward.16
$region0: #{language_model_forward.16}
  #allocation0 [shape = 'u32[]', space=smem, size = 0x4, offset = 0x4, fixed_abs, tag = 'smem constant byte address 0x4 - core index']
  #allocation1 [shape = 'u32[72,128]{1,0:T(1,128)}', space=vmem, size = 0x9000, scoped, tag = 'internal scratch']
  %s0 = inlined_call_operand.vmem [shape: f32[16,32], index: 0, kind: input, shape index: {}]
  %s1 = inlined_call_operand.vmem [shape: f32[1,32], index: 1, kind: input, shape index: {}]
  %s2 = inlined_call_operand.vmem [shape: f32[1,32], index: 2, kind: input, shape index: {}]
  %s3 = inlined_call_operand.vmem [shape: f32[16,32], index: 3, kind: output, shape index: {}]
  %s4 = sld [smem:[#allocation0]]
  $region22: #{language_model_forward.16} parent=0
    _
  %s6 = ssub.s32 1, %s4
  %s7 = scalar_select 0, %s6, %s4
  // Predicated region
  $region2: #{language_model_forward.16} parent=0 // pred_check
    _
  $region3: #{language_model_forward.16} parent=0 // pred_check_branch
    %9 = sbr.rel (0) target = $region5
  $region4: #{language_model_forward.16} parent=0 // pred_region
    _
  $region5: #{language_model_forward.16} parent=0 // pred_fallthru
    _
  // Predicated region
  $region6: #{language_model_forward.16} parent=0 // pred_check
    _
  $region7: #{language_model_forward.16} parent=0 // pred_check_branch
    %11 = sbr.rel (0) target = $region9
  $region8: #{language_model_forward.16} parent=0 // pred_region
    _
  $region9: #{language_model_forward.16} parent=0 // pred_fallthru
    _
  // Predicated region
  $region10: #{language_model_forward.16} parent=0 // pred_check
    _
  $region11: #{language_model_forward.16} parent=0 // pred_check_branch
    %13 = sbr.rel (0) target = $region13
  $region12: #{language_model_forward.16} parent=0 // pred_region
    _
  $region13: #{language_model_forward.16} parent=0 // pred_fallthru
    _
  %v14 = vld [vmem:[%s0] sm:$0xff]
  %v15 = vld [vmem:[%s0 + $0x8] sm:$0xff]
  %vm16 = vcmask 261120
  %v17 = vsel %vm16, %v14, 0.0
  %18 = vadd.xlane.f32.xlu0 %v17
  %v19 = vpop.xlane.xlu0 %18
  %v20 = vsel %vm16, %v15, 0.0
  %21 = vadd.xlane.f32.xlu0 %v20
  %v22 = vpop.xlane.xlu0 %21
  %v23 = vrcp.pop 32.0
  %v24 = vmul.f32 32.0, %v23
  %v25 = vsub.f32 1.0, %v24
  %v26 = vmul.f32 %v23, %v25
  %v27 = vadd.f32 %v23, %v26
  %vm28 = vweird.f32 %v23
  %v29 = vsel %vm28, %v23, %v27
  %v30 = vmul.f32 %v19, %v29
  %v31 = vmul.f32 %v22, %v29
  %v32 = vsub.f32 %v14, %v30
  %v33 = vsub.f32 %v15, %v31
  %v34 = vmul.f32 %v32, %v32
  %v35 = vmul.f32 %v33, %v33
  %v36 = vsel %vm16, %v34, 0.0
  %37 = vadd.xlane.f32.xlu0 %v36
  %v38 = vpop.xlane.xlu0 %37
  %v39 = vsel %vm16, %v35, 0.0
  %40 = vadd.xlane.f32.xlu0 %v39
  %v41 = vpop.xlane.xlu0 %40
  %v42 = vmul.f32 %v38, %v29
  %v43 = vmul.f32 %v41, %v29
  %v44 = vadd.f32 %v42, 1e-05
  %v45 = vadd.f32 %v43, 1e-05
  %v46 = vrsqrt.pop %v44
  %v47 = vmul.f32 %v46, %v44
  %v48 = vmul.f32 %v47, %v46
  %v49 = vmul.f32 0.5, %v48
  %v50 = vsub.f32 1.5, %v49
  %v51 = vmul.f32 %v46, %v50
  %vm52 = vweird.f32 %v44
  %vm53 = vweird.f32 %v46
  %vm54 = vmor %vm52, %vm53
  %v55 = vsel %vm54, %v46, %v51
  %v56 = vrsqrt.pop %v45
  %v57 = vmul.f32 %v56, %v45
  %v58 = vmul.f32 %v57, %v56
  %v59 = vmul.f32 0.5, %v58
  %v60 = vsub.f32 1.5, %v59
  %v61 = vmul.f32 %v56, %v60
  %vm62 = vweird.f32 %v45
  %vm63 = vweird.f32 %v56
  %vm64 = vmor %vm62, %vm63
  %v65 = vsel %vm64, %v56, %v61
  %v66 = vmul.f32 %v32, %v55
  %v67 = vmul.f32 %v33, %v65
  %v68 = vld [vmem:[%s1] sm:$0x1]
  %v70 = vperm.slane %v68, 0
  %v72 = vmul.f32 %v66, %v70
  %v73 = vmul.f32 %v67, %v70
  %v74 = vld [vmem:[%s2] sm:$0x1]
  %v76 = vperm.slane %v74, 0
  %v78 = vadd.f32 %v72, %v76
  %v79 = vadd.f32 %v73, %v76
  %80 = vst.msk [vmem:[%s3] sm:$0xff] %vm16, %v78
  %81 = vst.msk [vmem:[%s3 + $0x8] sm:$0xff] %vm16, %v79
  // Predicated region
  $region14: #{language_model_forward.16} parent=0 // pred_check
    _
  $region15: #{language_model_forward.16} parent=0 // pred_check_branch
    %83 = sbr.rel (0) target = $region17
  $region16: #{language_model_forward.16} parent=0 // pred_region
    _
  $region17: #{language_model_forward.16} parent=0 // pred_fallthru
    _
  // Predicated region
  $region18: #{language_model_forward.16} parent=0 // pred_check
    _
  $region19: #{language_model_forward.16} parent=0 // pred_check_branch
    %85 = sbr.rel (0) target = $region21
  $region20: #{language_model_forward.16} parent=0 // pred_region
    _
  $region21: #{language_model_forward.16} parent=0 // pred_fallthru
    _

// kernel: language_model_forward.18
$region0: #{language_model_forward.18}
  #allocation0 [shape = 'u32[]', space=smem, size = 0x4, offset = 0x4, fixed_abs, tag = 'smem constant byte address 0x4 - core index']
  #allocation1 [shape = 'u32[72,128]{1,0:T(1,128)}', space=vmem, size = 0x9000, scoped, tag = 'internal scratch']
  %s0 = inlined_call_operand.vmem [shape: f32[2,4,8,8], index: 0, kind: input, shape index: {}]
  %s1 = inlined_call_operand.vmem [shape: f32[2,4,8,8], index: 1, kind: input, shape index: {}]
  %s2 = inlined_call_operand.vmem [shape: f32[2,4,8,8], index: 2, kind: input, shape index: {}]
  %s3 = inlined_call_operand.vmem [shape: f32[2,8,8], index: 3, kind: input, shape index: {}]
  %s4 = inlined_call_operand.vmem [shape: f32[2,4,8,8], index: 4, kind: output, shape index: {}]
  %s5 = sld [smem:[#allocation0]]
  $region49: #{language_model_forward.18} parent=0
    _
  %s7 = ssub.s32 1, %s5
  %s8 = scalar_select 0, %s7, %s5
  loop: start=0, step=1, limit=10
  $region2: #{language_model_forward.18} parent=0 // loop_pre_header
    _
  $region3: #{language_model_forward.18} parent=0 // loop_header
    %s10 = sphi 0, %s14
    %p11 = scmp.ge.s32.totalorder %s10, 10
    %s17 = sphi 0, %s29
    %s18 = sphi 0, %s25
    %s19 = sphi 0, %s17
    %s20 = sphi 0, %s18
    %s21 = sphi 0, %s19
    %s22 = sphi 0, %s20
    %s34 = sphi 0, %s36
    %s37 = sphi 0, %s34
    %s38 = sphi 0, %s37
    %s54 = sphi 0, %s38
    %s62 = sphi 0, %s64
    %s65 = sphi 0, %s62
    %s66 = sphi 0, %s65
    %s82 = sphi 0, %s66
    %s90 = sphi 0, %s92
    %s93 = sphi 0, %s90
    %s94 = sphi 0, %s93
    %s110 = sphi 0, %s94
    %s116 = sphi 0, %s118
    %s119 = sphi 0, %s116
    %s120 = sphi 0, %s119
    %s136 = sphi 0, %s120
    %s144 = sphi 0, %s146
    %s147 = sphi 0, %s144
    %s148 = sphi 0, %s147
    %s164 = sphi 0, %s148
  $region4: #{language_model_forward.18} parent=0 // loop_header_branch
    %13 = sbr.rel (%p11) target = $region8
  $region5: #{language_model_forward.18} parent=0 // loop_body
    %s15 = ssub.s32 %s10, 1
    %s16 = ssub.s32 %s10, 2
    %s23 = sadd.s32 1, %s18
    %p24 = scmp.ge.s32.totalorder %s23, 4
    %s25 = scalar_select %p24, 0, %s23
    %s26 = sadd.s32 1, %s17
    %s27 = scalar_select %p24, %s26, %s17
    %p28 = scmp.ge.s32.totalorder %s27, 2
    %s29 = scalar_select %p28, 0, %s27
    %s30 = ssub.s32 %s17, %s29
    %s31 = ssub.s32 %s18, %s25
    %s32 = sor.u32 %s30, %s31
    %p33 = scmp.eq.s32.totalorder %s32, 0
    %s35 = sadd.s32 %s34, 1
    %s36 = scalar_select %p33, %s34, %s35
    %p39 = pneg %p33
    %p40 = scmp.eq.s32.totalorder %s10, 7
    %p41 = por %p39, %p40
    %p42 = scmp.ne.s32.totalorder %s34, %s37
    %p43 = scmp.eq.s32.totalorder %s10, 0
    %p44 = por %p42, %p43
    %p45 = scmp.ne.s32.totalorder %s34, %s37
    %p46 = scmp.eq.s32.totalorder %s15, 7
    %p47 = por %p45, %p46
    %p48 = scmp.ne.s32.totalorder %s37, %s38
    %p49 = scmp.eq.s32.totalorder %s15, 0
    %p50 = por %p48, %p49
    %p51 = scmp.ne.s32.totalorder %s37, %s38
    %p52 = scmp.eq.s32.totalorder %s16, 7
    %p53 = por %p51, %p52
    %p55 = scmp.ne.s32.totalorder %s38, %s54
    %p56 = scmp.eq.s32.totalorder %s16, 0
    %p57 = por %p55, %p56
    %s58 = ssub.s32 %s17, %s29
    %s59 = ssub.s32 %s18, %s25
    %s60 = sor.u32 %s58, %s59
    %p61 = scmp.eq.s32.totalorder %s60, 0
    %s63 = sadd.s32 %s62, 1
    %s64 = scalar_select %p61, %s62, %s63
    %p67 = pneg %p61
    %p68 = scmp.eq.s32.totalorder %s10, 7
    %p69 = por %p67, %p68
    %p70 = scmp.ne.s32.totalorder %s62, %s65
    %p71 = scmp.eq.s32.totalorder %s10, 0
    %p72 = por %p70, %p71
    %p73 = scmp.ne.s32.totalorder %s62, %s65
    %p74 = scmp.eq.s32.totalorder %s15, 7
    %p75 = por %p73, %p74
    %p76 = scmp.ne.s32.totalorder %s65, %s66
    %p77 = scmp.eq.s32.totalorder %s15, 0
    %p78 = por %p76, %p77
    %p79 = scmp.ne.s32.totalorder %s65, %s66
    %p80 = scmp.eq.s32.totalorder %s16, 7
    %p81 = por %p79, %p80
    %p83 = scmp.ne.s32.totalorder %s66, %s82
    %p84 = scmp.eq.s32.totalorder %s16, 0
    %p85 = por %p83, %p84
    %s86 = ssub.s32 %s17, %s29
    %s87 = ssub.s32 %s18, %s25
    %s88 = sor.u32 %s86, %s87
    %p89 = scmp.eq.s32.totalorder %s88, 0
    %s91 = sadd.s32 %s90, 1
    %s92 = scalar_select %p89, %s90, %s91
    %p95 = pneg %p89
    %p96 = scmp.eq.s32.totalorder %s10, 7
    %p97 = por %p95, %p96
    %p98 = scmp.ne.s32.totalorder %s90, %s93
    %p99 = scmp.eq.s32.totalorder %s10, 0
    %p100 = por %p98, %p99
    %p101 = scmp.ne.s32.totalorder %s90, %s93
    %p102 = scmp.eq.s32.totalorder %s15, 7
    %p103 = por %p101, %p102
    %p104 = scmp.ne.s32.totalorder %s93, %s94
    %p105 = scmp.eq.s32.totalorder %s15, 0
    %p106 = por %p104, %p105
    %p107 = scmp.ne.s32.totalorder %s93, %s94
    %p108 = scmp.eq.s32.totalorder %s16, 7
    %p109 = por %p107, %p108
    %p111 = scmp.ne.s32.totalorder %s94, %s110
    %p112 = scmp.eq.s32.totalorder %s16, 0
    %p113 = por %p111, %p112
    %s114 = ssub.s32 %s17, %s29
    %p115 = scmp.eq.s32.totalorder %s114, 0
    %s117 = sadd.s32 %s116, 1
    %s118 = scalar_select %p115, %s116, %s117
    %p121 = pneg %p115
    %p122 = scmp.eq.s32.totalorder %s10, 7
    %p123 = por %p121, %p122
    %p124 = scmp.ne.s32.totalorder %s116, %s119
    %p125 = scmp.eq.s32.totalorder %s10, 0
    %p126 = por %p124, %p125
    %p127 = scmp.ne.s32.totalorder %s116, %s119
    %p128 = scmp.eq.s32.totalorder %s15, 7
    %p129 = por %p127, %p128
    %p130 = scmp.ne.s32.totalorder %s119, %s120
    %p131 = scmp.eq.s32.totalorder %s15, 0
    %p132 = por %p130, %p131
    %p133 = scmp.ne.s32.totalorder %s119, %s120
    %p134 = scmp.eq.s32.totalorder %s16, 7
    %p135 = por %p133, %p134
    %p137 = scmp.ne.s32.totalorder %s120, %s136
    %p138 = scmp.eq.s32.totalorder %s16, 0
    %p139 = por %p137, %p138
    %s140 = ssub.s32 %s17, %s29
    %s141 = ssub.s32 %s18, %s25
    %s142 = sor.u32 %s140, %s141
    %p143 = scmp.eq.s32.totalorder %s142, 0
    %s145 = sadd.s32 %s144, 1
    %s146 = scalar_select %p143, %s144, %s145
    %p149 = pneg %p143
    %p150 = scmp.eq.s32.totalorder %s10, 7
    %p151 = por %p149, %p150
    %p152 = scmp.ne.s32.totalorder %s144, %s147
    %p153 = scmp.eq.s32.totalorder %s10, 0
    %p154 = por %p152, %p153
    %p155 = scmp.ne.s32.totalorder %s144, %s147
    %p156 = scmp.eq.s32.totalorder %s15, 7
    %p157 = por %p155, %p156
    %p158 = scmp.ne.s32.totalorder %s147, %s148
    %p159 = scmp.eq.s32.totalorder %s15, 0
    %p160 = por %p158, %p159
    %p161 = scmp.ne.s32.totalorder %s147, %s148
    %p162 = scmp.eq.s32.totalorder %s16, 7
    %p163 = por %p161, %p162
    %p165 = scmp.ne.s32.totalorder %s148, %s164
    %p166 = scmp.eq.s32.totalorder %s16, 0
    %p167 = por %p165, %p166
    %p168 = scmp.le.s32.totalorder 1, %s10
    %p169 = scmp.lt.s32.totalorder %s10, 9
    %p170 = pnand %p168, %p169
    %p171 = pneg %p170
    // Predicated region
    $region9: #{language_model_forward.18} parent=5 // pred_check
      _
    $region10: #{language_model_forward.18} parent=5 // pred_check_branch
      %173 = sbr.rel (%p170) target = $region12
    $region11: #{language_model_forward.18} parent=5 // pred_region
      %s174 = ssub.s32 %s10, 1
    $region12: #{language_model_forward.18} parent=5 // pred_fallthru
      _
    %p175 = scmp.lt.s32.totalorder %s10, 8
    // Predicated region
    $region13: #{language_model_forward.18} parent=5 // pred_check
      %p176 = pneg %p175
    $region14: #{language_model_forward.18} parent=5 // pred_check_branch
      %178 = sbr.rel (%p176) target = $region16
    $region15: #{language_model_forward.18} parent=5 // pred_region
      // Predicated region
      $region17: #{language_model_forward.18} parent=15 // pred_check
        %p179 = pneg %p44
      $region18: #{language_model_forward.18} parent=15 // pred_check_branch
        %181 = sbr.rel (%p179) target = $region20
      $region19: #{language_model_forward.18} parent=15 // pred_region
        %p182 = scmp.lt.s32.totalorder %s17, 1
        %s183 = scalar_select %p182, %s17, 1
        %p184 = scmp.lt.s32.totalorder %s18, 3
        %s185 = scalar_select %p184, %s18, 3
        %s186 = smul.addr %s183, 4
        %s187 = sadd.s32 %s185, %s186
        %s188 = smul.addr %s187, 8
        %s189 = scalar_lea.vmem %s0, %s188
      $region20: #{language_model_forward.18} parent=15 // pred_fallthru
        _
      // Predicated region
      $region21: #{language_model_forward.18} parent=15 // pred_check
        %p190 = pneg %p72
      $region22: #{language_model_forward.18} parent=15 // pred_check_branch
        %192 = sbr.rel (%p190) target = $region24
      $region23: #{language_model_forward.18} parent=15 // pred_region
        %p193 = scmp.lt.s32.totalorder %s17, 1
        %s194 = scalar_select %p193, %s17, 1
        %p195 = scmp.lt.s32.totalorder %s18, 3
        %s196 = scalar_select %p195, %s18, 3
        %s197 = smul.addr %s194, 4
        %s198 = sadd.s32 %s196, %s197
        %s199 = smul.addr %s198, 8
        %s200 = scalar_lea.vmem %s1, %s199
      $region24: #{language_model_forward.18} parent=15 // pred_fallthru
        _
      // Predicated region
      $region25: #{language_model_forward.18} parent=15 // pred_check
        %p201 = pneg %p100
      $region26: #{language_model_forward.18} parent=15 // pred_check_branch
        %203 = sbr.rel (%p201) target = $region28
      $region27: #{language_model_forward.18} parent=15 // pred_region
        %p204 = scmp.lt.s32.totalorder %s17, 1
        %s205 = scalar_select %p204, %s17, 1
        %p206 = scmp.lt.s32.totalorder %s18, 3
        %s207 = scalar_select %p206, %s18, 3
        %s208 = smul.addr %s205, 4
        %s209 = sadd.s32 %s207, %s208
        %s210 = smul.addr %s209, 8
        %s211 = scalar_lea.vmem %s2, %s210
      $region28: #{language_model_forward.18} parent=15 // pred_fallthru
        _
      // Predicated region
      $region29: #{language_model_forward.18} parent=15 // pred_check
        %p212 = pneg %p126
      $region30: #{language_model_forward.18} parent=15 // pred_check_branch
        %214 = sbr.rel (%p212) target = $region32
      $region31: #{language_model_forward.18} parent=15 // pred_region
        %p215 = scmp.lt.s32.totalorder %s17, 1
        %s216 = scalar_select %p215, %s17, 1
        %s217 = smul.addr %s216, 8
        %s218 = scalar_lea.vmem %s3, %s217
      $region32: #{language_model_forward.18} parent=15 // pred_fallthru
        _
    $region16: #{language_model_forward.18} parent=5 // pred_fallthru
      _
    %p219 = scmp.le.s32.totalorder 1, %s10
    %p220 = scmp.lt.s32.totalorder %s10, 9
    %p221 = pnand %p219, %p220
    %p222 = pneg %p221
    // Predicated region
    $region33: #{language_model_forward.18} parent=5 // pred_check
      _
    $region34: #{language_model_forward.18} parent=5 // pred_check_branch
      %224 = sbr.rel (%p221) target = $region36
    $region35: #{language_model_forward.18} parent=5 // pred_region
      %s225 = ssub.s32 %s10, 1
      %p226 = scmp.lt.s32.totalorder %s19, 1
      %s227 = scalar_select %p226, %s19, 1
      %p228 = scmp.lt.s32.totalorder %s20, 3
      %s229 = scalar_select %p228, %s20, 3
      %s230 = smul.addr %s227, 4
      %s231 = sadd.s32 %s229, %s230
      %s232 = smul.addr %s231, 8
      %s233 = scalar_lea.vmem %s0, %s232
      %p234 = pneg %p50
      %p235 = pneg %p47
      %p236 = scmp.lt.s32.totalorder %s19, 1
      %s237 = scalar_select %p236, %s19, 1
      %p238 = scmp.lt.s32.totalorder %s20, 3
      %s239 = scalar_select %p238, %s20, 3
      %s240 = smul.addr %s237, 4
      %s241 = sadd.s32 %s239, %s240
      %s242 = smul.addr %s241, 8
      %s243 = scalar_lea.vmem %s1, %s242
      %p244 = pneg %p78
      %p245 = pneg %p75
      %p246 = scmp.lt.s32.totalorder %s19, 1
      %s247 = scalar_select %p246, %s19, 1
      %p248 = scmp.lt.s32.totalorder %s20, 3
      %s249 = scalar_select %p248, %s20, 3
      %s250 = smul.addr %s247, 4
      %s251 = sadd.s32 %s249, %s250
      %s252 = smul.addr %s251, 8
      %s253 = scalar_lea.vmem %s2, %s252
      %p254 = pneg %p106
      %p255 = pneg %p103
      %p256 = scmp.lt.s32.totalorder %s19, 1
      %s257 = scalar_select %p256, %s19, 1
      %s258 = smul.addr %s257, 8
      %s259 = scalar_lea.vmem %s3, %s258
      %p260 = pneg %p132
      %p261 = pneg %p129
      %p262 = pneg %p160
      %p263 = pneg %p157
      %p264 = scmp.lt.s32.totalorder %s19, 1
      %s265 = scalar_select %p264, %s19, 1
      %p266 = scmp.lt.s32.totalorder %s20, 3
      %s267 = scalar_select %p266, %s20, 3
      %s268 = smul.addr %s265, 4
      %s269 = sadd.s32 %s267, %s268
      %s270 = smul.addr %s269, 8
      %s271 = scalar_lea.vmem %s4, %s270
      %p272 = scmp.lt.s32.totalorder %s19, 1
      %s273 = scalar_select %p272, %s19, 1
      %p274 = scmp.lt.s32.totalorder %s20, 3
      %s275 = scalar_select %p274, %s20, 3
      %s276 = smul.addr %s273, 4
      %s277 = sadd.s32 %s275, %s276
      %s278 = smul.addr %s277, 8
      %s279 = scalar_lea.vmem %s0, %s278
      %p280 = scmp.lt.s32.totalorder %s19, 1
      %s281 = scalar_select %p280, %s19, 1
      %p282 = scmp.lt.s32.totalorder %s20, 3
      %s283 = scalar_select %p282, %s20, 3
      %s284 = smul.addr %s281, 4
      %s285 = sadd.s32 %s283, %s284
      %s286 = smul.addr %s285, 8
      %s287 = scalar_lea.vmem %s1, %s286
      %p288 = scmp.lt.s32.totalorder %s19, 1
      %s289 = scalar_select %p288, %s19, 1
      %p290 = scmp.lt.s32.totalorder %s20, 3
      %s291 = scalar_select %p290, %s20, 3
      %s292 = smul.addr %s289, 4
      %s293 = sadd.s32 %s291, %s292
      %s294 = smul.addr %s293, 8
      %s295 = scalar_lea.vmem %s2, %s294
      %p296 = scmp.lt.s32.totalorder %s19, 1
      %s297 = scalar_select %p296, %s19, 1
      %s298 = smul.addr %s297, 8
      %s299 = scalar_lea.vmem %s3, %s298
      %p300 = scmp.lt.s32.totalorder %s19, 1
      %s301 = scalar_select %p300, %s19, 1
      %p302 = scmp.lt.s32.totalorder %s20, 3
      %s303 = scalar_select %p302, %s20, 3
      %s304 = smul.addr %s301, 4
      %s305 = sadd.s32 %s303, %s304
      %s306 = smul.addr %s305, 8
      %s307 = scalar_lea.vmem %s4, %s306
      %v308 = vld [vmem:[%s279] sm:$0xff]
      %v309 = vld [vmem:[%s287] sm:$0xff]
      %v310 = vld [vmem:[%s295] sm:$0xff]
      %vm311 = vcmask 64512
      %v313 = vsel %vm311, %v308, 0
      %v316 = vsel %vm311, %v309, 0
      %318 = vmatpush.xpose.msra.mxu0 0.0
      %319 = vmatpush.xpose.msra.mxu0 0.0
      %320 = vmatpush.xpose.msra.mxu0 0.0
      %321 = vmatpush.xpose.msra.mxu0 0.0
      %322 = vmatpush.xpose.msra.mxu0 0.0
      %323 = vmatpush.xpose.msra.mxu0 0.0
      %324 = vmatpush.xpose.msra.mxu0 0.0
      %325 = vmatpush.xpose.msra.mxu0 0.0
      %326 = vmatpush.xpose.msra.mxu0 0.0
      %327 = vmatpush.xpose.msra.mxu0 0.0
      %328 = vmatpush.xpose.msra.mxu0 0.0
      %329 = vmatpush.xpose.msra.mxu0 0.0
      %330 = vmatpush.xpose.msra.mxu0 0.0
      %331 = vmatpush.xpose.msra.mxu0 0.0
      %332 = vmatpush.xpose.msra.mxu0 0.0
      %333 = vmatpush.xpose.msra.mxu0 %v316
      %334 = vmatmul.f32.gmra.mxu0 %v313
      %v335 = vpop.f32.mrf.mxu0
      %v336 = vadd.f32 0.0, %v335
      %337 = vdwg.mxu0
      %v338 = vmul.f32 %v336, 0.35355338
      %v339 = vld [vmem:[%s299] sm:$0xff]
      %vm340 = vcmp.gt.f32.partialorder %v339, 0.0
      %v341 = vsel %vm340, %v338, -1e+09
      %v342 = vsel %vm311, %v341, -inf
      %343 = vmax.xlane.f32.xlu0 %v342
      %v344 = vpop.xlane.xlu0 %343
      %v345 = vsub.f32 %v341, %v344
      %v346 = vmul.f32 %v345, 1.442695
      %v347 = vpow.pop %v346
      %v348 = vsel %vm311, %v347, 0.0
      %349 = vadd.xlane.f32.xlu0 %v348
      %v350 = vpop.xlane.xlu0 %349
      %v351 = vrcp.pop %v350
      %v352 = vmul.f32 %v350, %v351
      %v353 = vsub.f32 1.0, %v352
      %v354 = vmul.f32 %v351, %v353
      %v355 = vadd.f32 %v351, %v354
      %vm356 = vweird.f32 %v350
      %vm357 = vweird.f32 %v351
      %vm358 = vmor %vm356, %vm357
      %v359 = vsel %vm358, %v351, %v355
      %v360 = vand.u32 2147483647, %v350
      %vm361 = vcmp.eq.f32.partialorder %v360, 8.507059e+37
      %v362 = vand.u32 %v350, 2147483648
      %v363 = vor.u32 1.1754944e-38, %v362
      %v364 = vsel %vm361, %v363, %v359
      %v365 = vmul.f32 %v347, %v364
      %v367 = vsel %vm311, %v365, 0
      %369 = vmatpush.msra.mxu0 0.0
      %370 = vmatpush.msra.mxu0 0.0
      %371 = vmatpush.msra.mxu0 0.0
      %372 = vmatpush.msra.mxu0 0.0
      %373 = vmatpush.msra.mxu0 0.0
      %374 = vmatpush.msra.mxu0 0.0
      %375 = vmatpush.msra.mxu0 0.0
      %376 = vmatpush.msra.mxu0 0.0
      %377 = vmatpush.msra.mxu0 0.0
      %378 = vmatpush.msra.mxu0 0.0
      %379 = vmatpush.msra.mxu0 0.0
      %380 = vmatpush.msra.mxu0 0.0
      %381 = vmatpush.msra.mxu0 0.0
      %382 = vmatpush.msra.mxu0 0.0
      %383 = vmatpush.msra.mxu0 0.0
      %384 = vmatpush.msra.mxu0 %v310
      %385 = vmatmul.f32.gmra.mxu0 %v367
      %v386 = vpop.f32.mrf.mxu0
      %v387 = vadd.f32 0.0, %v386
      %388 = vdwg.mxu0
      %389 = vst.msk [vmem:[%s307] sm:$0xff] %vm311, %v387
      %p390 = scmp.lt.s32.totalorder %s19, 1
      %s391 = scalar_select %p390, %s19, 1
      %p392 = scmp.lt.s32.totalorder %s20, 3
      %s393 = scalar_select %p392, %s20, 3
      %s394 = smul.addr %s391, 4
      %s395 = sadd.s32 %s393, %s394
      %s396 = smul.addr %s395, 8
      %s397 = scalar_lea.vmem %s4, %s396
      // Predicated region
      $region37: #{language_model_forward.18} parent=35 // pred_check
        %p398 = pneg %p157
      $region38: #{language_model_forward.18} parent=35 // pred_check_branch
        %400 = sbr.rel (%p398) target = $region40
      $region39: #{language_model_forward.18} parent=35 // pred_region
        _
      $region40: #{language_model_forward.18} parent=35 // pred_fallthru
        _
    $region36: #{language_model_forward.18} parent=5 // pred_fallthru
      _
    %p401 = scmp.le.s32.totalorder 2, %s10
    // Predicated region
    $region41: #{language_model_forward.18} parent=5 // pred_check
      %p402 = pneg %p401
    $region42: #{language_model_forward.18} parent=5 // pred_check_branch
      %404 = sbr.rel (%p402) target = $region44
    $region43: #{language_model_forward.18} parent=5 // pred_region
      %s405 = ssub.s32 %s10, 2
      // Predicated region
      $region45: #{language_model_forward.18} parent=43 // pred_check
        %p406 = pneg %p163
      $region46: #{language_model_forward.18} parent=43 // pred_check_branch
        %408 = sbr.rel (%p406) target = $region48
      $region47: #{language_model_forward.18} parent=43 // pred_region
        %p409 = scmp.lt.s32.totalorder %s21, 1
        %s410 = scalar_select %p409, %s21, 1
        %p411 = scmp.lt.s32.totalorder %s22, 3
        %s412 = scalar_select %p411, %s22, 3
        %s413 = smul.addr %s410, 4
        %s414 = sadd.s32 %s412, %s413
        %s415 = smul.addr %s414, 8
        %s416 = scalar_lea.vmem %s4, %s415
      $region48: #{language_model_forward.18} parent=43 // pred_fallthru
        _
    $region44: #{language_model_forward.18} parent=5 // pred_fallthru
      _
  $region6: #{language_model_forward.18} parent=0 // loop_footer
    %s14 = sadd.s32 1, %s10
  $region7: #{language_model_forward.18} parent=0 // loop_footer_branch
    %9 = sbr.rel target = $region3
  $region8: #{language_model_forward.18} parent=0 // loop_exit
    _

// kernel: language_model_forward.17
$region0: #{language_model_forward.17}
  #allocation0 [shape = 'u32[]', space=smem, size = 0x4, offset = 0x4, fixed_abs, tag = 'smem constant byte address 0x4 - core index']
  #allocation1 [shape = 'u32[72,128]{1,0:T(1,128)}', space=vmem, size = 0x9000, scoped, tag = 'internal scratch']
  #allocation2 [shape = 'f32[16,128]{1,0:T(8,128)}', space=vmem, size = 0x2000, scoped, tag = 'scratch operand']
  %s0 = inlined_call_operand.vmem [shape: f32[16,128], index: 0, kind: input, shape index: {}]
  %s1 = inlined_call_operand.vmem [shape: f32[128,128], index: 1, kind: input, shape index: {}]
  %s2 = inlined_call_operand.vmem [shape: f32[1,128], index: 2, kind: input, shape index: {}]
  %s3 = inlined_call_operand.vmem [shape: f32[16,128], index: 3, kind: output, shape index: {}]
  %s4 = sld [smem:[#allocation0]]
  $region30: #{language_model_forward.17} parent=0
    _
  %s6 = ssub.s32 1, %s4
  %s7 = scalar_select 0, %s6, %s4
  // Predicated region
  $region2: #{language_model_forward.17} parent=0 // pred_check
    _
  $region3: #{language_model_forward.17} parent=0 // pred_check_branch
    %9 = sbr.rel (0) target = $region5
  $region4: #{language_model_forward.17} parent=0 // pred_region
    _
  $region5: #{language_model_forward.17} parent=0 // pred_fallthru
    _
  // Predicated region
  $region6: #{language_model_forward.17} parent=0 // pred_check
    _
  $region7: #{language_model_forward.17} parent=0 // pred_check_branch
    %11 = sbr.rel (0) target = $region9
  $region8: #{language_model_forward.17} parent=0 // pred_region
    _
  $region9: #{language_model_forward.17} parent=0 // pred_fallthru
    _
  // Predicated region
  $region10: #{language_model_forward.17} parent=0 // pred_check
    _
  $region11: #{language_model_forward.17} parent=0 // pred_check_branch
    %13 = sbr.rel (0) target = $region13
  $region12: #{language_model_forward.17} parent=0 // pred_region
    _
  $region13: #{language_model_forward.17} parent=0 // pred_fallthru
    _
  %p14 = scmp.eq.s32.totalorder 0, 0
  // Predicated region
  $region14: #{language_model_forward.17} parent=0 // pred_check
    %p15 = pneg %p14
  $region15: #{language_model_forward.17} parent=0 // pred_check_branch
    %17 = sbr.rel (%p15) target = $region17
  $region16: #{language_model_forward.17} parent=0 // pred_region
    %18 = vst [vmem:[#allocation2] sm:$0xff] 0.0
    %19 = vst [vmem:[#allocation2 + $0x8] sm:$0xff] 0.0
  $region17: #{language_model_forward.17} parent=0 // pred_fallthru
    _
  %v20 = vld [vmem:[#allocation2] sm:$0xff]
  %v21 = vld [vmem:[#allocation2 + $0x8] sm:$0xff]
  %v22 = vld [vmem:[%s0] sm:$0xff]
  %v23 = vld [vmem:[%s0 + $0x8] sm:$0xff]
  %v24 = vld [vmem:[%s1] sm:$0xff]
  %v25 = vld [vmem:[%s1 + $0x8] sm:$0xff]
  %v26 = vld [vmem:[%s1 + $0x10] sm:$0xff]
  %v27 = vld [vmem:[%s1 + $0x18] sm:$0xff]
  %v28 = vld [vmem:[%s1 + $0x20] sm:$0xff]
  %v29 = vld [vmem:[%s1 + $0x28] sm:$0xff]
  %v30 = vld [vmem:[%s1 + $0x30] sm:$0xff]
  %v31 = vld [vmem:[%s1 + $0x38] sm:$0xff]
  %v32 = vld [vmem:[%s1 + $0x40] sm:$0xff]
  %v33 = vld [vmem:[%s1 + $0x48] sm:$0xff]
  %v34 = vld [vmem:[%s1 + $0x50] sm:$0xff]
  %v35 = vld [vmem:[%s1 + $0x58] sm:$0xff]
  %v36 = vld [vmem:[%s1 + $0x60] sm:$0xff]
  %v37 = vld [vmem:[%s1 + $0x68] sm:$0xff]
  %v38 = vld [vmem:[%s1 + $0x70] sm:$0xff]
  %v39 = vld [vmem:[%s1 + $0x78] sm:$0xff]
  %40 = vmatpush.msra.mxu0 %v39
  %41 = vmatpush.msra.mxu0 %v38
  %42 = vmatpush.msra.mxu0 %v37
  %43 = vmatpush.msra.mxu0 %v36
  %44 = vmatpush.msra.mxu0 %v35
  %45 = vmatpush.msra.mxu0 %v34
  %46 = vmatpush.msra.mxu0 %v33
  %47 = vmatpush.msra.mxu0 %v32
  %48 = vmatpush.msra.mxu0 %v31
  %49 = vmatpush.msra.mxu0 %v30
  %50 = vmatpush.msra.mxu0 %v29
  %51 = vmatpush.msra.mxu0 %v28
  %52 = vmatpush.msra.mxu0 %v27
  %53 = vmatpush.msra.mxu0 %v26
  %54 = vmatpush.msra.mxu0 %v25
  %55 = vmatpush.msra.mxu0 %v24
  %56 = vmatmul.f32.gmra.mxu0 %v22
  %v57 = vpop.f32.mrf.mxu0
  %v58 = vadd.f32 0.0, %v57
  %59 = vmatmul.f32.gmra.mxu0 %v23
  %v60 = vpop.f32.mrf.mxu0
  %v61 = vadd.f32 0.0, %v60
  %62 = vdwg.mxu0
  %v63 = vadd.f32 %v20, %v58
  %v64 = vadd.f32 %v21, %v61
  %65 = vst [vmem:[#allocation2] sm:$0xff] %v63
  %66 = vst [vmem:[#allocation2 + $0x8] sm:$0xff] %v64
  // Predicated region
  $region18: #{language_model_forward.17} parent=0 // pred_check
    %p67 = pneg %p14
  $region19: #{language_model_forward.17} parent=0 // pred_check_branch
    %69 = sbr.rel (%p67) target = $region21
  $region20: #{language_model_forward.17} parent=0 // pred_region
    %v70 = vld [vmem:[#allocation2] sm:$0xff]
    %v71 = vld [vmem:[#allocation2 + $0x8] sm:$0xff]
    %v72 = vld [vmem:[%s2] sm:$0x1]
    %v74 = vperm.slane %v72, 0
    %v76 = vadd.f32 %v70, %v74
    %v77 = vadd.f32 %v71, %v74
    %78 = vst [vmem:[%s3] sm:$0xff] %v76
    %79 = vst [vmem:[%s3 + $0x8] sm:$0xff] %v77
  $region21: #{language_model_forward.17} parent=0 // pred_fallthru
    _
  // Predicated region
  $region22: #{language_model_forward.17} parent=0 // pred_check
    _
  $region23: #{language_model_forward.17} parent=0 // pred_check_branch
    %81 = sbr.rel (0) target = $region25
  $region24: #{language_model_forward.17} parent=0 // pred_region
    _
  $region25: #{language_model_forward.17} parent=0 // pred_fallthru
    _
  // Predicated region
  $region26: #{language_model_forward.17} parent=0 // pred_check
    _
  $region27: #{language_model_forward.17} parent=0 // pred_check_branch
    %83 = sbr.rel (0) target = $region29
  $region28: #{language_model_forward.17} parent=0 // pred_region
    _
  $region29: #{language_model_forward.17} parent=0 // pred_fallthru
    _

// kernel: language_model_forward.21
$region0: #{language_model_forward.21}
  #allocation0 [shape = 'u32[]', space=smem, size = 0x4, offset = 0x4, fixed_abs, tag = 'smem constant byte address 0x4 - core index']
  #allocation1 [shape = 'u32[72,128]{1,0:T(1,128)}', space=vmem, size = 0x9000, scoped, tag = 'internal scratch']
  #allocation2 [shape = 'f32[16,128]{1,0:T(8,128)}', space=vmem, size = 0x2000, scoped, tag = 'scratch operand']
  %s0 = inlined_call_operand.vmem [shape: f32[16,128], index: 0, kind: input, shape index: {}]
  %s1 = inlined_call_operand.vmem [shape: f32[128,128], index: 1, kind: input, shape index: {}]
  %s2 = inlined_call_operand.vmem [shape: f32[1,128], index: 2, kind: input, shape index: {}]
  %s3 = inlined_call_operand.vmem [shape: f32[16,128], index: 3, kind: output, shape index: {}]
  %s4 = sld [smem:[#allocation0]]
  $region30: #{language_model_forward.21} parent=0
    _
  %s6 = ssub.s32 1, %s4
  %s7 = scalar_select 0, %s6, %s4
  // Predicated region
  $region2: #{language_model_forward.21} parent=0 // pred_check
    _
  $region3: #{language_model_forward.21} parent=0 // pred_check_branch
    %9 = sbr.rel (0) target = $region5
  $region4: #{language_model_forward.21} parent=0 // pred_region
    _
  $region5: #{language_model_forward.21} parent=0 // pred_fallthru
    _
  // Predicated region
  $region6: #{language_model_forward.21} parent=0 // pred_check
    _
  $region7: #{language_model_forward.21} parent=0 // pred_check_branch
    %11 = sbr.rel (0) target = $region9
  $region8: #{language_model_forward.21} parent=0 // pred_region
    _
  $region9: #{language_model_forward.21} parent=0 // pred_fallthru
    _
  // Predicated region
  $region10: #{language_model_forward.21} parent=0 // pred_check
    _
  $region11: #{language_model_forward.21} parent=0 // pred_check_branch
    %13 = sbr.rel (0) target = $region13
  $region12: #{language_model_forward.21} parent=0 // pred_region
    _
  $region13: #{language_model_forward.21} parent=0 // pred_fallthru
    _
  %p14 = scmp.eq.s32.totalorder 0, 0
  // Predicated region
  $region14: #{language_model_forward.21} parent=0 // pred_check
    %p15 = pneg %p14
  $region15: #{language_model_forward.21} parent=0 // pred_check_branch
    %17 = sbr.rel (%p15) target = $region17
  $region16: #{language_model_forward.21} parent=0 // pred_region
    %18 = vst [vmem:[#allocation2] sm:$0xff] 0.0
    %19 = vst [vmem:[#allocation2 + $0x8] sm:$0xff] 0.0
  $region17: #{language_model_forward.21} parent=0 // pred_fallthru
    _
  %v20 = vld [vmem:[#allocation2] sm:$0xff]
  %v21 = vld [vmem:[#allocation2 + $0x8] sm:$0xff]
  %v22 = vld [vmem:[%s0] sm:$0xff]
  %v23 = vld [vmem:[%s0 + $0x8] sm:$0xff]
  %v24 = vld [vmem:[%s1] sm:$0xff]
  %v25 = vld [vmem:[%s1 + $0x8] sm:$0xff]
  %v26 = vld [vmem:[%s1 + $0x10] sm:$0xff]
  %v27 = vld [vmem:[%s1 + $0x18] sm:$0xff]
  %v28 = vld [vmem:[%s1 + $0x20] sm:$0xff]
  %v29 = vld [vmem:[%s1 + $0x28] sm:$0xff]
  %v30 = vld [vmem:[%s1 + $0x30] sm:$0xff]
  %v31 = vld [vmem:[%s1 + $0x38] sm:$0xff]
  %v32 = vld [vmem:[%s1 + $0x40] sm:$0xff]
  %v33 = vld [vmem:[%s1 + $0x48] sm:$0xff]
  %v34 = vld [vmem:[%s1 + $0x50] sm:$0xff]
  %v35 = vld [vmem:[%s1 + $0x58] sm:$0xff]
  %v36 = vld [vmem:[%s1 + $0x60] sm:$0xff]
  %v37 = vld [vmem:[%s1 + $0x68] sm:$0xff]
  %v38 = vld [vmem:[%s1 + $0x70] sm:$0xff]
  %v39 = vld [vmem:[%s1 + $0x78] sm:$0xff]
  %40 = vmatpush.msra.mxu0 %v39
  %41 = vmatpush.msra.mxu0 %v38
  %42 = vmatpush.msra.mxu0 %v37
  %43 = vmatpush.msra.mxu0 %v36
  %44 = vmatpush.msra.mxu0 %v35
  %45 = vmatpush.msra.mxu0 %v34
  %46 = vmatpush.msra.mxu0 %v33
  %47 = vmatpush.msra.mxu0 %v32
  %48 = vmatpush.msra.mxu0 %v31
  %49 = vmatpush.msra.mxu0 %v30
  %50 = vmatpush.msra.mxu0 %v29
  %51 = vmatpush.msra.mxu0 %v28
  %52 = vmatpush.msra.mxu0 %v27
  %53 = vmatpush.msra.mxu0 %v26
  %54 = vmatpush.msra.mxu0 %v25
  %55 = vmatpush.msra.mxu0 %v24
  %56 = vmatmul.f32.gmra.mxu0 %v22
  %v57 = vpop.f32.mrf.mxu0
  %v58 = vadd.f32 0.0, %v57
  %59 = vmatmul.f32.gmra.mxu0 %v23
  %v60 = vpop.f32.mrf.mxu0
  %v61 = vadd.f32 0.0, %v60
  %62 = vdwg.mxu0
  %v63 = vadd.f32 %v20, %v58
  %v64 = vadd.f32 %v21, %v61
  %65 = vst [vmem:[#allocation2] sm:$0xff] %v63
  %66 = vst [vmem:[#allocation2 + $0x8] sm:$0xff] %v64
  // Predicated region
  $region18: #{language_model_forward.21} parent=0 // pred_check
    %p67 = pneg %p14
  $region19: #{language_model_forward.21} parent=0 // pred_check_branch
    %69 = sbr.rel (%p67) target = $region21
  $region20: #{language_model_forward.21} parent=0 // pred_region
    %v70 = vld [vmem:[#allocation2] sm:$0xff]
    %v71 = vld [vmem:[#allocation2 + $0x8] sm:$0xff]
    %v72 = vld [vmem:[%s2] sm:$0x1]
    %v74 = vperm.slane %v72, 0
    %v76 = vadd.f32 %v70, %v74
    %v77 = vadd.f32 %v71, %v74
    %v78 = vmax.f32 %v76, 0.0
    %v79 = vmax.f32 %v77, 0.0
    %80 = vst [vmem:[%s3] sm:$0xff] %v78
    %81 = vst [vmem:[%s3 + $0x8] sm:$0xff] %v79
  $region21: #{language_model_forward.21} parent=0 // pred_fallthru
    _
  // Predicated region
  $region22: #{language_model_forward.21} parent=0 // pred_check
    _
  $region23: #{language_model_forward.21} parent=0 // pred_check_branch
    %83 = sbr.rel (0) target = $region25
  $region24: #{language_model_forward.21} parent=0 // pred_region
    _
  $region25: #{language_model_forward.21} parent=0 // pred_fallthru
    _
  // Predicated region
  $region26: #{language_model_forward.21} parent=0 // pred_check
    _
  $region27: #{language_model_forward.21} parent=0 // pred_check_branch
    %85 = sbr.rel (0) target = $region29
  $region28: #{language_model_forward.21} parent=0 // pred_region
    _
  $region29: #{language_model_forward.21} parent=0 // pred_fallthru
    _

// kernel: language_model_forward.31
$region0: #{language_model_forward.31}
  #allocation0 [shape = 'u32[]', space=smem, size = 0x4, offset = 0x4, fixed_abs, tag = 'smem constant byte address 0x4 - core index']
  #allocation1 [shape = 'u32[72,128]{1,0:T(1,128)}', space=vmem, size = 0x9000, scoped, tag = 'internal scratch']
  #allocation2 [shape = 'f32[16,128]{1,0:T(8,128)}', space=vmem, size = 0x2000, scoped, tag = 'scratch operand']
  %s0 = inlined_call_operand.vmem [shape: f32[16,128], index: 0, kind: input, shape index: {}]
  %s1 = inlined_call_operand.vmem [shape: f32[128,128], index: 1, kind: input, shape index: {}]
  %s2 = inlined_call_operand.vmem [shape: f32[1,128], index: 2, kind: input, shape index: {}]
  %s3 = inlined_call_operand.hbm [shape: f32[16,128], index: 3, kind: output, shape index: {}]
  %s4 = sld [smem:[#allocation0]]
  $region30: #{language_model_forward.31} parent=0
    _
  %s6 = ssub.s32 1, %s4
  %s7 = scalar_select 0, %s6, %s4
  $region1: #{language_model_forward.31} parent=0
    #allocation3 [shape = 'u8[8192]{0}', space=vmem, size = 0x2000, scoped, tag = 'output window, operand 0, single buffered']
    #allocation4 [shape = 's32[1]{0}', space=sflag, size = 0x4, scoped, tag = 'scoped memory for language_model_forward.31']
    %8 = vsyncpa [#allocation4], 0
    // Predicated region
    $region2: #{language_model_forward.31} parent=1 // pred_check
      _
    $region3: #{language_model_forward.31} parent=1 // pred_check_branch
      %10 = sbr.rel (0) target = $region5
    $region4: #{language_model_forward.31} parent=1 // pred_region
      _
    $region5: #{language_model_forward.31} parent=1 // pred_fallthru
      _
    // Predicated region
    $region6: #{language_model_forward.31} parent=1 // pred_check
      _
    $region7: #{language_model_forward.31} parent=1 // pred_check_branch
      %12 = sbr.rel (0) target = $region9
    $region8: #{language_model_forward.31} parent=1 // pred_region
      _
    $region9: #{language_model_forward.31} parent=1 // pred_fallthru
      _
    // Predicated region
    $region10: #{language_model_forward.31} parent=1 // pred_check
      _
    $region11: #{language_model_forward.31} parent=1 // pred_check_branch
      %14 = sbr.rel (0) target = $region13
    $region12: #{language_model_forward.31} parent=1 // pred_region
      _
    $region13: #{language_model_forward.31} parent=1 // pred_fallthru
      _
    %p15 = scmp.eq.s32.totalorder 0, 0
    // Predicated region
    $region14: #{language_model_forward.31} parent=1 // pred_check
      %p16 = pneg %p15
    $region15: #{language_model_forward.31} parent=1 // pred_check_branch
      %18 = sbr.rel (%p16) target = $region17
    $region16: #{language_model_forward.31} parent=1 // pred_region
      %19 = vst [vmem:[#allocation2] sm:$0xff] 0.0
      %20 = vst [vmem:[#allocation2 + $0x8] sm:$0xff] 0.0
    $region17: #{language_model_forward.31} parent=1 // pred_fallthru
      _
    %v21 = vld [vmem:[#allocation2] sm:$0xff]
    %v22 = vld [vmem:[#allocation2 + $0x8] sm:$0xff]
    %v23 = vld [vmem:[%s0] sm:$0xff]
    %v24 = vld [vmem:[%s0 + $0x8] sm:$0xff]
    %v25 = vld [vmem:[%s1] sm:$0xff]
    %v26 = vld [vmem:[%s1 + $0x8] sm:$0xff]
    %v27 = vld [vmem:[%s1 + $0x10] sm:$0xff]
    %v28 = vld [vmem:[%s1 + $0x18] sm:$0xff]
    %v29 = vld [vmem:[%s1 + $0x20] sm:$0xff]
    %v30 = vld [vmem:[%s1 + $0x28] sm:$0xff]
    %v31 = vld [vmem:[%s1 + $0x30] sm:$0xff]
    %v32 = vld [vmem:[%s1 + $0x38] sm:$0xff]
    %v33 = vld [vmem:[%s1 + $0x40] sm:$0xff]
    %v34 = vld [vmem:[%s1 + $0x48] sm:$0xff]
    %v35 = vld [vmem:[%s1 + $0x50] sm:$0xff]
    %v36 = vld [vmem:[%s1 + $0x58] sm:$0xff]
    %v37 = vld [vmem:[%s1 + $0x60] sm:$0xff]
    %v38 = vld [vmem:[%s1 + $0x68] sm:$0xff]
    %v39 = vld [vmem:[%s1 + $0x70] sm:$0xff]
    %v40 = vld [vmem:[%s1 + $0x78] sm:$0xff]
    %41 = vmatpush.msra.mxu0 %v40
    %42 = vmatpush.msra.mxu0 %v39
    %43 = vmatpush.msra.mxu0 %v38
    %44 = vmatpush.msra.mxu0 %v37
    %45 = vmatpush.msra.mxu0 %v36
    %46 = vmatpush.msra.mxu0 %v35
    %47 = vmatpush.msra.mxu0 %v34
    %48 = vmatpush.msra.mxu0 %v33
    %49 = vmatpush.msra.mxu0 %v32
    %50 = vmatpush.msra.mxu0 %v31
    %51 = vmatpush.msra.mxu0 %v30
    %52 = vmatpush.msra.mxu0 %v29
    %53 = vmatpush.msra.mxu0 %v28
    %54 = vmatpush.msra.mxu0 %v27
    %55 = vmatpush.msra.mxu0 %v26
    %56 = vmatpush.msra.mxu0 %v25
    %57 = vmatmul.f32.gmra.mxu0 %v23
    %v58 = vpop.f32.mrf.mxu0
    %v59 = vadd.f32 0.0, %v58
    %60 = vmatmul.f32.gmra.mxu0 %v24
    %v61 = vpop.f32.mrf.mxu0
    %v62 = vadd.f32 0.0, %v61
    %63 = vdwg.mxu0
    %v64 = vadd.f32 %v21, %v59
    %v65 = vadd.f32 %v22, %v62
    %66 = vst [vmem:[#allocation2] sm:$0xff] %v64
    %67 = vst [vmem:[#allocation2 + $0x8] sm:$0xff] %v65
    // Predicated region
    $region18: #{language_model_forward.31} parent=1 // pred_check
      %p68 = pneg %p15
    $region19: #{language_model_forward.31} parent=1 // pred_check_branch
      %70 = sbr.rel (%p68) target = $region21
    $region20: #{language_model_forward.31} parent=1 // pred_region
      %v71 = vld [vmem:[#allocation2] sm:$0xff]
      %v72 = vld [vmem:[#allocation2 + $0x8] sm:$0xff]
      %v73 = vld [vmem:[%s2] sm:$0x1]
      %v75 = vperm.slane %v73, 0
      %v77 = vadd.f32 %v71, %v75
      %v78 = vadd.f32 %v72, %v75
      %79 = vst [vmem:[#allocation3] sm:$0xff] %v77
      %80 = vst [vmem:[#allocation3 + $0x8] sm:$0xff] %v78
    $region21: #{language_model_forward.31} parent=1 // pred_fallthru
      _
    // Predicated region
    $region22: #{language_model_forward.31} parent=1 // pred_check
      _
    $region23: #{language_model_forward.31} parent=1 // pred_check_branch
      %82 = sbr.rel (0) target = $region25
    $region24: #{language_model_forward.31} parent=1 // pred_region
      %84 = vsyncadd [#allocation4], 0
      %s85 = sshll.u32 [#allocation3], 4
      %s86 = int_to_ptr.vmem [resolvable:$true] %s85
      %s87 = sshll.u32 %s3, 4
      %s88 = int_to_ptr.hbm [resolvable:$true] %s87
      %93 = dma.vmem_to_hbm [thread:$0]  %s86, 256, %s88, [#allocation4], 128, 128, 8
    $region25: #{language_model_forward.31} parent=1 // pred_fallthru
      _
    // Predicated region
    $region26: #{language_model_forward.31} parent=1 // pred_check
      _
    $region27: #{language_model_forward.31} parent=1 // pred_check_branch
      %95 = sbr.rel (0) target = $region29
    $region28: #{language_model_forward.31} parent=1 // pred_region
      %97 = dma.done [#allocation4], 256
    $region29: #{language_model_forward.31} parent=1 // pred_fallthru
      _
    %98 = vsyncpa [#allocation4], 1

// kernel: language_model_forward.19
$region0: #{language_model_forward.19}
  #allocation0 [shape = 'u32[]', space=smem, size = 0x4, offset = 0x4, fixed_abs, tag = 'smem constant byte address 0x4 - core index']
  #allocation1 [shape = 'u32[72,128]{1,0:T(1,128)}', space=vmem, size = 0x9000, scoped, tag = 'internal scratch']
  #allocation2 [shape = 'f32[16,128]{1,0:T(8,128)}', space=vmem, size = 0x2000, scoped, tag = 'scratch operand']
  %s0 = inlined_call_operand.vmem [shape: f32[16,128], index: 0, kind: input, shape index: {}]
  %s1 = inlined_call_operand.vmem [shape: f32[128,128], index: 1, kind: input, shape index: {}]
  %s2 = inlined_call_operand.vmem [shape: f32[1,128], index: 2, kind: input, shape index: {}]
  %s3 = inlined_call_operand.vmem [shape: f32[16,128], index: 3, kind: input, shape index: {}]
  %s4 = inlined_call_operand.vmem [shape: f32[16,128], index: 4, kind: output, shape index: {}]
  %s5 = sld [smem:[#allocation0]]
  $region34: #{language_model_forward.19} parent=0
    _
  %s7 = ssub.s32 1, %s5
  %s8 = scalar_select 0, %s7, %s5
  // Predicated region
  $region2: #{language_model_forward.19} parent=0 // pred_check
    _
  $region3: #{language_model_forward.19} parent=0 // pred_check_branch
    %10 = sbr.rel (0) target = $region5
  $region4: #{language_model_forward.19} parent=0 // pred_region
    _
  $region5: #{language_model_forward.19} parent=0 // pred_fallthru
    _
  // Predicated region
  $region6: #{language_model_forward.19} parent=0 // pred_check
    _
  $region7: #{language_model_forward.19} parent=0 // pred_check_branch
    %12 = sbr.rel (0) target = $region9
  $region8: #{language_model_forward.19} parent=0 // pred_region
    _
  $region9: #{language_model_forward.19} parent=0 // pred_fallthru
    _
  // Predicated region
  $region10: #{language_model_forward.19} parent=0 // pred_check
    _
  $region11: #{language_model_forward.19} parent=0 // pred_check_branch
    %14 = sbr.rel (0) target = $region13
  $region12: #{language_model_forward.19} parent=0 // pred_region
    _
  $region13: #{language_model_forward.19} parent=0 // pred_fallthru
    _
  // Predicated region
  $region14: #{language_model_forward.19} parent=0 // pred_check
    _
  $region15: #{language_model_forward.19} parent=0 // pred_check_branch
    %16 = sbr.rel (0) target = $region17
  $region16: #{language_model_forward.19} parent=0 // pred_region
    _
  $region17: #{language_model_forward.19} parent=0 // pred_fallthru
    _
  %p17 = scmp.eq.s32.totalorder 0, 0
  // Predicated region
  $region18: #{language_model_forward.19} parent=0 // pred_check
    %p18 = pneg %p17
  $region19: #{language_model_forward.19} parent=0 // pred_check_branch
    %20 = sbr.rel (%p18) target = $region21
  $region20: #{language_model_forward.19} parent=0 // pred_region
    %21 = vst [vmem:[#allocation2] sm:$0xff] 0.0
    %22 = vst [vmem:[#allocation2 + $0x8] sm:$0xff] 0.0
  $region21: #{language_model_forward.19} parent=0 // pred_fallthru
    _
  %v23 = vld [vmem:[#allocation2] sm:$0xff]
  %v24 = vld [vmem:[#allocation2 + $0x8] sm:$0xff]
  %v25 = vld [vmem:[%s0] sm:$0xff]
  %v26 = vld [vmem:[%s0 + $0x8] sm:$0xff]
  %v27 = vld [vmem:[%s1] sm:$0xff]
  %v28 = vld [vmem:[%s1 + $0x8] sm:$0xff]
  %v29 = vld [vmem:[%s1 + $0x10] sm:$0xff]
  %v30 = vld [vmem:[%s1 + $0x18] sm:$0xff]
  %v31 = vld [vmem:[%s1 + $0x20] sm:$0xff]
  %v32 = vld [vmem:[%s1 + $0x28] sm:$0xff]
  %v33 = vld [vmem:[%s1 + $0x30] sm:$0xff]
  %v34 = vld [vmem:[%s1 + $0x38] sm:$0xff]
  %v35 = vld [vmem:[%s1 + $0x40] sm:$0xff]
  %v36 = vld [vmem:[%s1 + $0x48] sm:$0xff]
  %v37 = vld [vmem:[%s1 + $0x50] sm:$0xff]
  %v38 = vld [vmem:[%s1 + $0x58] sm:$0xff]
  %v39 = vld [vmem:[%s1 + $0x60] sm:$0xff]
  %v40 = vld [vmem:[%s1 + $0x68] sm:$0xff]
  %v41 = vld [vmem:[%s1 + $0x70] sm:$0xff]
  %v42 = vld [vmem:[%s1 + $0x78] sm:$0xff]
  %43 = vmatpush.msra.mxu0 %v42
  %44 = vmatpush.msra.mxu0 %v41
  %45 = vmatpush.msra.mxu0 %v40
  %46 = vmatpush.msra.mxu0 %v39
  %47 = vmatpush.msra.mxu0 %v38
  %48 = vmatpush.msra.mxu0 %v37
  %49 = vmatpush.msra.mxu0 %v36
  %50 = vmatpush.msra.mxu0 %v35
  %51 = vmatpush.msra.mxu0 %v34
  %52 = vmatpush.msra.mxu0 %v33
  %53 = vmatpush.msra.mxu0 %v32
  %54 = vmatpush.msra.mxu0 %v31
  %55 = vmatpush.msra.mxu0 %v30
  %56 = vmatpush.msra.mxu0 %v29
  %57 = vmatpush.msra.mxu0 %v28
  %58 = vmatpush.msra.mxu0 %v27
  %59 = vmatmul.f32.gmra.mxu0 %v25
  %v60 = vpop.f32.mrf.mxu0
  %v61 = vadd.f32 0.0, %v60
  %62 = vmatmul.f32.gmra.mxu0 %v26
  %v63 = vpop.f32.mrf.mxu0
  %v64 = vadd.f32 0.0, %v63
  %65 = vdwg.mxu0
  %v66 = vadd.f32 %v23, %v61
  %v67 = vadd.f32 %v24, %v64
  %68 = vst [vmem:[#allocation2] sm:$0xff] %v66
  %69 = vst [vmem:[#allocation2 + $0x8] sm:$0xff] %v67
  // Predicated region
  $region22: #{language_model_forward.19} parent=0 // pred_check
    %p70 = pneg %p17
  $region23: #{language_model_forward.19} parent=0 // pred_check_branch
    %72 = sbr.rel (%p70) target = $region25
  $region24: #{language_model_forward.19} parent=0 // pred_region
    %v73 = vld [vmem:[#allocation2] sm:$0xff]
    %v74 = vld [vmem:[#allocation2 + $0x8] sm:$0xff]
    %v75 = vld [vmem:[%s2] sm:$0x1]
    %v77 = vperm.slane %v75, 0
    %v79 = vadd.f32 %v73, %v77
    %v80 = vadd.f32 %v74, %v77
    %v81 = vld [vmem:[%s3] sm:$0xff]
    %v82 = vld [vmem:[%s3 + $0x8] sm:$0xff]
    %v83 = vadd.f32 %v79, %v81
    %v84 = vadd.f32 %v80, %v82
    %85 = vst [vmem:[%s4] sm:$0xff] %v83
    %86 = vst [vmem:[%s4 + $0x8] sm:$0xff] %v84
  $region25: #{language_model_forward.19} parent=0 // pred_fallthru
    _
  // Predicated region
  $region26: #{language_model_forward.19} parent=0 // pred_check
    _
  $region27: #{language_model_forward.19} parent=0 // pred_check_branch
    %88 = sbr.rel (0) target = $region29
  $region28: #{language_model_forward.19} parent=0 // pred_region
    _
  $region29: #{language_model_forward.19} parent=0 // pred_fallthru
    _
  // Predicated region
  $region30: #{language_model_forward.19} parent=0 // pred_check
    _
  $region31: #{language_model_forward.19} parent=0 // pred_check_branch
    %90 = sbr.rel (0) target = $region33
  $region32: #{language_model_forward.19} parent=0 // pred_region
    _
  $region33: #{language_model_forward.19} parent=0 // pred_fallthru
    _

</llo_original>
